<compile_context>
chip_gen: v7x
topology: tpu7x:2x2x1
jax: 0.10.0
libtpu: 0.0.40
codegen_flags: <defaults>
</compile_context>

<pallas_src>
import functools

import jax
import jax.numpy as jnp
from jax.experimental import pallas as pl
from jax.experimental.pallas import tpu as pltpu


# ----------------------------------------------------------------------------
# Pallas kernel: fused bidirectional LSTM recurrence over one (Tc, Bc) chunk.
#   gin_ref : (Tc, Bc, 8*Hh) bf16  precomputed x@W_ih + (b_ih+b_hh) for both
#             directions; columns interleaved [i_f,i_b,f_f,f_b,o_f,o_b,g_f,g_b];
#             the backward half is already time-reversed (row t holds the
#             backward-direction input for original time T-1-t).
#   whh_ref : (2*Hh, 8*Hh) bf16 block-diagonal recurrent weights, same column
#             layout; rows = [h_fwd | h_bwd].
#   out_ref : (Tc, Bc, 2*Hh) bf16  [h_fwd | h_bwd_reversed-time] (fixed up in XLA).
#   h_scr   : (Bc, 2*Hh) bf16 hidden carry (fwd lanes | bwd lanes), persists
#             across time chunks.
#   c_scr   : (Bc, 2*Hh) f32 cell carry.
# ----------------------------------------------------------------------------
def _bilstm_kernel(gin_ref, whh_ref, out_ref, h_scr, c_scr, *, hid, t_chunk, unroll):
    @pl.when(pl.program_id(1) == 0)            # first time chunk of this batch chunk
    def _():
        h_scr[...] = jnp.zeros_like(h_scr)
        c_scr[...] = jnp.zeros_like(c_scr)

    H2 = 2 * hid

    def step(t, carry):
        h = h_scr[...]                                                    # bf16 (Bc, 2Hh)
        # bf16 gin + f32 MXU accumulation -> f32 gates; gate math stays f32.
        gates = gin_ref[t] + jnp.dot(h, whh_ref[...],
                                     preferred_element_type=jnp.float32)  # (Bc, 8Hh)
        sig = jax.nn.sigmoid(gates[:, 0:3 * H2])    # [i_f,i_b,f_f,f_b,o_f,o_b] 3 vregs
        g = jnp.tanh(gates[:, 3 * H2:4 * H2])       # [g_f, g_b]                1 vreg
        i = sig[:, 0:H2]                            # aligned full-vreg 128-lane slices
        f = sig[:, H2:2 * H2]
        o = sig[:, 2 * H2:3 * H2]
        c_new = f * c_scr[...] + i * g
        h_new = o * jnp.tanh(c_new)
        c_scr[...] = c_new
        h_bf = h_new.astype(h_scr.dtype)            # single f32->bf16 convert at tail
        h_scr[...] = h_bf
        out_ref[t] = h_bf                           # ONE lane-dense 128-lane store
        return carry

    jax.lax.fori_loop(0, t_chunk, step, 0, unroll=unroll)


def _pick_chunk(total, target):
    c = min(total, max(1, target))
    while total % c != 0:
        c -= 1
    return c


def bilstm_recurrence(gates_in, whh_comb):
    """gates_in: (T, B, 8*Hh) bf16 ; whh_comb: (2*Hh, 8*Hh) bf16 -> (T, B, 2*Hh) bf16.

    Backward lanes [Hh:2Hh] of the result are in REVERSED time order (caller fixes).
    """
    T, B, G = gates_in.shape
    hid = G // 8

    # Time chunking (double-buffered gin/out DMA against compute, bounded VMEM).
    t_chunk = _pick_chunk(T, 32)
    n_t = T // t_chunk
    # Batch chunking: split only when large enough to keep (8,128) alignment; on
    # v7x the leading "parallel" axis then shards across the two TensorCores.
    b_chunk = B // 2 if (B >= 16 and B % 16 == 0) else B
    n_b = B // b_chunk

    unroll = min(t_chunk, 8)
    kernel = functools.partial(_bilstm_kernel, hid=hid, t_chunk=t_chunk, unroll=unroll)

    # VMEM budget: double-buffered gin + out chunks, resident weights, scratch.
    gin_chunk_bytes = t_chunk * b_chunk * G * 2          # bf16
    out_chunk_bytes = t_chunk * b_chunk * 2 * hid * 2    # bf16
    whh_bytes = 2 * hid * G * 2                          # bf16
    scratch_bytes = b_chunk * 2 * hid * (2 + 4)          # bf16 h + f32 c
    need = 2 * (gin_chunk_bytes + out_chunk_bytes) + whh_bytes + scratch_bytes
    vmem_limit = int(min(max(2 * need + (4 << 20), 16 << 20), 64 << 20))

    return pl.pallas_call(
        kernel,
        out_shape=jax.ShapeDtypeStruct((T, B, 2 * hid), jnp.bfloat16),
        grid_spec=pltpu.PrefetchScalarGridSpec(
            num_scalar_prefetch=0,
            grid=(n_b, n_t),
            in_specs=[
                pl.BlockSpec((t_chunk, b_chunk, G), lambda b, t: (t, b, 0)),   # gin chunk
                pl.BlockSpec((2 * hid, G), lambda b, t: (0, 0)),               # W_hh (resident)
            ],
            out_specs=pl.BlockSpec((t_chunk, b_chunk, 2 * hid), lambda b, t: (t, b, 0)),
            scratch_shapes=[
                pltpu.VMEM((b_chunk, 2 * hid), jnp.bfloat16),   # h carry (fwd|bwd)
                pltpu.VMEM((b_chunk, 2 * hid), jnp.float32),    # c carry (fwd|bwd)
            ],
        ),
        compiler_params=pltpu.CompilerParams(
            dimension_semantics=("parallel", "arbitrary"),
            vmem_limit_bytes=vmem_limit,
        ),
    )(gates_in, whh_comb)


# ----------------------------------------------------------------------------
# Full forward pass: embedding lookup, hoisted input projection, fused BiLSTM
# kernel, hidden2tag + CrossEntropyLoss(ignore_index=<pad>) + accuracy (in XLA).
# ----------------------------------------------------------------------------
def bilstm_forward(token_ids, labels, params, pad_id, unk_id):
    # token_ids: (T, B) int32 seq-major ; labels: (B, T) int32 (PyTorch labels.t()).
    T, B = token_ids.shape
    Hh = params["w_hh_f"].shape[0]
    E = params["embedding"].shape[1]

    emb = jnp.take(params["embedding"], token_ids, axis=0)            # (T, B, E)
    x2d = emb.reshape(T * B, E)

    # Hoisted input-to-hidden projection: one matmul per direction over ALL
    # timesteps, biases folded in. Backward stream time-reversed and the two
    # directions interleaved per gate -> [i_f,i_b,f_f,f_b,o_f,o_b,g_f,g_b].
    gin_f = (x2d @ params["w_ih_f"] + params["b_f"]).reshape(T, B, 4, Hh)
    gin_b = (x2d @ params["w_ih_b"] + params["b_b"]).reshape(T, B, 4, Hh)[::-1]
    gates_in = jnp.stack([gin_f, gin_b], axis=3).reshape(T, B, 8 * Hh)
    gates_in = gates_in.astype(jnp.bfloat16)                          # halve HBM/VMEM traffic

    # Combined recurrent weight matrix: rows [h_fwd | h_bwd], columns in the same
    # interleaved layout (block-diagonal so each direction only sees its own h).
    wf = params["w_hh_f"].reshape(Hh, 4, 1, Hh)
    wb = params["w_hh_b"].reshape(Hh, 4, 1, Hh)
    z = jnp.zeros_like(wf)
    whh_comb = jnp.concatenate(
        [jnp.concatenate([wf, z], axis=2).reshape(Hh, 8 * Hh),
         jnp.concatenate([z, wb], axis=2).reshape(Hh, 8 * Hh)],
        axis=0).astype(jnp.bfloat16)                                   # (2Hh, 8Hh)

    raw = bilstm_recurrence(gates_in, whh_comb)                        # (T, B, 2Hh) bf16
    # Undo the backward-direction time reversal outside the kernel (cheap XLA op,
    # off the recurrence critical path).
    lstm_out = jnp.concatenate([raw[:, :, :Hh], raw[::-1, :, Hh:]], axis=-1)

    # hidden2tag + loss/accuracy in XLA (tagset is tiny). Keep activations in the
    # time-major layout and transpose the cheap int labels instead.
    H = 2 * Hh
    feats = lstm_out.reshape(T * B, H) @ params["w_tag"] + params["b_tag"]  # (T*B, C) f32

    labels_tm = labels.T.reshape(-1)                                   # time-major flatten
    mask = labels_tm != pad_id
    logp = jax.nn.log_softmax(feats, axis=-1)
    nll = -jnp.take_along_axis(logp, labels_tm[:, None], axis=-1)[:, 0]
    n_valid = jnp.maximum(jnp.sum(mask), 1)
    loss = jnp.sum(jnp.where(mask, nll, 0.0)) / n_valid

    # predict_slots: forbid <pad>/<unk> (prediction path only), argmax, masked acc.
    masked_feats = feats.at[:, pad_id].set(-jnp.inf).at[:, unk_id].set(-jnp.inf)
    preds = jnp.argmax(masked_feats, axis=-1)
    acc = jnp.sum(jnp.where(mask, labels_tm == preds, False)).astype(jnp.float32) / n_valid
    return loss, acc


# ----------------------------------------------------------------------------
# Deterministic parameter init (shapes from BiLSTM.__init__). LSTM weights are
# stored pre-transposed as (E, 4Hh)/(Hh, 4Hh) with gate column order [i, f, o, g]
# (sigmoid gates contiguous; permute columns if importing PyTorch's [i, f, g, o]);
# biases are bias_ih + bias_hh.
# ----------------------------------------------------------------------------
def init_params(key, vocab_size, tagset_size, emb_dim, hidden_dim):
    Hh = hidden_dim // 2
    keys = jax.random.split(key, 12)
    bound = 1.0 / jnp.sqrt(Hh)

    def u(k, shape):
        return jax.random.uniform(k, shape, jnp.float32, -bound, bound)

    return {
        "embedding": jax.random.normal(keys[0], (vocab_size, emb_dim), jnp.float32),
        "w_ih_f": u(keys[1], (emb_dim, 4 * Hh)),
        "w_hh_f": u(keys[2], (Hh, 4 * Hh)),
        "b_f": u(keys[3], (1, 4 * Hh)) + u(keys[4], (1, 4 * Hh)),
        "w_ih_b": u(keys[5], (emb_dim, 4 * Hh)),
        "w_hh_b": u(keys[6], (Hh, 4 * Hh)),
        "b_b": u(keys[7], (1, 4 * Hh)) + u(keys[8], (1, 4 * Hh)),
        "w_tag": u(keys[9], (hidden_dim, tagset_size)),
        "b_tag": u(keys[10], (tagset_size,)),
    }


if __name__ == "__main__":
    # Small shapes consistent with the module.
    T, B = 8, 8
    EMB_DIM, HIDDEN_DIM = 32, 128          # hidden_dim//2 = 64 per direction
    VOCAB_SIZE, TAGSET_SIZE = 64, 16
    PAD_ID, UNK_ID = 0, 1                  # slot_vocab['<pad>'], slot_vocab['<unk>']

    key = jax.random.PRNGKey(0)
    k_param, k_tok, k_lab = jax.random.split(key, 3)

    params = init_params(k_param, VOCAB_SIZE, TAGSET_SIZE, EMB_DIM, HIDDEN_DIM)

    token_ids = jax.random.randint(k_tok, (T, B), 2, VOCAB_SIZE, dtype=jnp.int32)  # (seq, batch)
    labels = jax.random.randint(k_lab, (B, T), 2, TAGSET_SIZE, dtype=jnp.int32)    # (batch, seq)
    # Simulate padded tails (ignored by the loss / accuracy).
    labels = labels.at[:, T - 2:].set(PAD_ID)

    fwd = jax.jit(functools.partial(bilstm_forward, pad_id=PAD_ID, unk_id=UNK_ID))
    loss, acc = fwd(token_ids, labels, params)
    jax.block_until_ready((loss, acc))

    assert jnp.isfinite(loss) and jnp.isfinite(acc)
    print("KERNEL_OK")
</pallas_src>

<mosaic_0001>
module attributes {stable_mosaic.version = 11 : i64} {
  func.func @_bilstm_kernel(%arg0: i32, %arg1: i32, %arg2: memref<8x8x512xbf16, #tpu.memory_space<vmem>>, %arg3: memref<128x512xbf16, #tpu.memory_space<vmem>>, %arg4: memref<8x8x128xbf16, #tpu.memory_space<vmem>>, %arg5: memref<8x128xbf16, #tpu.memory_space<vmem>>, %arg6: memref<8x128xf32, #tpu.memory_space<vmem>>) attributes {dimension_semantics = [#tpu.dimension_semantics<parallel>, #tpu.dimension_semantics<arbitrary>], iteration_bounds = array<i64: 1, 1>, scalar_prefetch = 0 : i64, scratch_operands = 2 : i64, tpu.core_type = #tpu.core_type<tc>, window_params = [{transform_indices = @transform_0, window_bounds = array<i64: 8, 8, 512>}, {pipeline_mode = #tpu.pipeline_mode<synchronous>, transform_indices = @transform_1, window_bounds = array<i64: 128, 512>}, {transform_indices = @transform_2, window_bounds = array<i64: 8, 8, 128>}]} {
    %c0_i32 = arith.constant 0 : i32
    %0 = arith.cmpi eq, %arg1, %c0_i32 : i32
    %1 = arith.extui %0 : i1 to i32
    %c0_i32_0 = arith.constant 0 : i32
    %2 = arith.cmpi ne, %1, %c0_i32_0 : i32
    scf.if %2 {
      %cst_128 = arith.constant 0.000000e+00 : bf16
      %259 = vector.broadcast %cst_128 : bf16 to vector<8x128xbf16>
      %c0_129 = arith.constant 0 : index
      %c0_130 = arith.constant 0 : index
      %260 = vector.load %arg5[%c0_129, %c0_130] : memref<8x128xbf16, #tpu.memory_space<vmem>>, vector<8x128xbf16>
      tpu.vector_store %arg5[%c0_129, %c0_130], %259 {strides = array<i32>} : memref<8x128xbf16, #tpu.memory_space<vmem>>, vector<8x128xbf16>,
      %cst_131 = arith.constant 0.000000e+00 : f32
      %261 = vector.broadcast %cst_131 : f32 to vector<8x128xf32>
      %c0_132 = arith.constant 0 : index
      %c0_133 = arith.constant 0 : index
      %262 = vector.load %arg6[%c0_132, %c0_133] : memref<8x128xf32, #tpu.memory_space<vmem>>, vector<8x128xf32>
      tpu.vector_store %arg6[%c0_132, %c0_133], %261 {strides = array<i32>} : memref<8x128xf32, #tpu.memory_space<vmem>>, vector<8x128xf32>,
    } else {
    }
    %c0_i32_1 = arith.constant 0 : i32
    %c0 = arith.constant 0 : index
    %c0_2 = arith.constant 0 : index
    %3 = vector.load %arg5[%c0, %c0_2] : memref<8x128xbf16, #tpu.memory_space<vmem>>, vector<8x128xbf16>
    %4 = arith.index_cast %c0_i32_1 : i32 to index
    %c0_3 = arith.constant 0 : index
    %c0_4 = arith.constant 0 : index
    %5 = vector.load %arg2[%4, %c0_3, %c0_4] : memref<8x8x512xbf16, #tpu.memory_space<vmem>>, vector<1x8x512xbf16>
    %6 = vector.shape_cast %5 : vector<1x8x512xbf16> to vector<8x512xbf16>
    %c0_5 = arith.constant 0 : index
    %c0_6 = arith.constant 0 : index
    %7 = vector.load %arg3[%c0_5, %c0_6] : memref<128x512xbf16, #tpu.memory_space<vmem>>, vector<128x512xbf16>
    %cst = arith.constant dense<0.000000e+00> : vector<8x512xf32>
    %8 = tpu.matmul %3, %7, %cst {dimension_numbers = #tpu.dot_dimension_numbers<[1], [0], [0], [1], [0, 0, 1, 1], [], []>} : vector<8x128xbf16>, vector<128x512xbf16>, vector<8x512xf32> -> vector<8x512xf32>
    %9 = arith.extf %6 : vector<8x512xbf16> to vector<8x512xf32>
    %10 = arith.addf %9, %8 : vector<8x512xf32>
    %11 = vector.extract_strided_slice %10 {offsets = [0, 0], sizes = [8, 384], strides = [1, 1]} : vector<8x512xf32> to vector<8x384xf32>
    %12 = arith.negf %11 : vector<8x384xf32>
    %13 = math.exp %12 : vector<8x384xf32>
    %cst_7 = arith.constant 1.000000e+00 : f32
    %14 = vector.broadcast %cst_7 : f32 to vector<8x384xf32>
    %15 = arith.addf %14, %13 : vector<8x384xf32>
    %16 = arith.divf %14, %15 : vector<8x384xf32>
    %17 = vector.extract_strided_slice %10 {offsets = [0, 384], sizes = [8, 128], strides = [1, 1]} : vector<8x512xf32> to vector<8x128xf32>
    %18 = math.tanh %17 : vector<8x128xf32>
    %19 = vector.extract_strided_slice %16 {offsets = [0, 0], sizes = [8, 128], strides = [1, 1]} : vector<8x384xf32> to vector<8x128xf32>
    %20 = vector.extract_strided_slice %16 {offsets = [0, 128], sizes = [8, 128], strides = [1, 1]} : vector<8x384xf32> to vector<8x128xf32>
    %21 = vector.extract_strided_slice %16 {offsets = [0, 256], sizes = [8, 128], strides = [1, 1]} : vector<8x384xf32> to vector<8x128xf32>
    %c0_8 = arith.constant 0 : index
    %c0_9 = arith.constant 0 : index
    %22 = vector.load %arg6[%c0_8, %c0_9] : memref<8x128xf32, #tpu.memory_space<vmem>>, vector<8x128xf32>
    %23 = arith.mulf %20, %22 : vector<8x128xf32>
    %24 = arith.mulf %19, %18 : vector<8x128xf32>
    %25 = arith.addf %23, %24 : vector<8x128xf32>
    %26 = math.tanh %25 : vector<8x128xf32>
    %27 = arith.mulf %21, %26 : vector<8x128xf32>
    %c0_10 = arith.constant 0 : index
    %c0_11 = arith.constant 0 : index
    %28 = vector.load %arg6[%c0_10, %c0_11] : memref<8x128xf32, #tpu.memory_space<vmem>>, vector<8x128xf32>
    tpu.vector_store %arg6[%c0_10, %c0_11], %25 {strides = array<i32>} : memref<8x128xf32, #tpu.memory_space<vmem>>, vector<8x128xf32>,
    %29 = arith.truncf %27 : vector<8x128xf32> to vector<8x128xbf16>
    %c0_12 = arith.constant 0 : index
    %c0_13 = arith.constant 0 : index
    %30 = vector.load %arg5[%c0_12, %c0_13] : memref<8x128xbf16, #tpu.memory_space<vmem>>, vector<8x128xbf16>
    tpu.vector_store %arg5[%c0_12, %c0_13], %29 {strides = array<i32>} : memref<8x128xbf16, #tpu.memory_space<vmem>>, vector<8x128xbf16>,
    %31 = arith.index_cast %c0_i32_1 : i32 to index
    %c0_14 = arith.constant 0 : index
    %c0_15 = arith.constant 0 : index
    %32 = vector.load %arg4[%31, %c0_14, %c0_15] : memref<8x8x128xbf16, #tpu.memory_space<vmem>>, vector<1x8x128xbf16>
    %33 = vector.shape_cast %32 : vector<1x8x128xbf16> to vector<8x128xbf16>
    %34 = vector.shape_cast %29 : vector<8x128xbf16> to vector<1x8x128xbf16>
    tpu.vector_store %arg4[%31, %c0_14, %c0_15], %34 {strides = array<i32>} : memref<8x8x128xbf16, #tpu.memory_space<vmem>>, vector<1x8x128xbf16>,
    %c1_i32 = arith.constant 1 : i32
    %c0_16 = arith.constant 0 : index
    %c0_17 = arith.constant 0 : index
    %35 = vector.load %arg5[%c0_16, %c0_17] : memref<8x128xbf16, #tpu.memory_space<vmem>>, vector<8x128xbf16>
    %36 = arith.index_cast %c1_i32 : i32 to index
    %c0_18 = arith.constant 0 : index
    %c0_19 = arith.constant 0 : index
    %37 = vector.load %arg2[%36, %c0_18, %c0_19] : memref<8x8x512xbf16, #tpu.memory_space<vmem>>, vector<1x8x512xbf16>
    %38 = vector.shape_cast %37 : vector<1x8x512xbf16> to vector<8x512xbf16>
    %c0_20 = arith.constant 0 : index
    %c0_21 = arith.constant 0 : index
    %39 = vector.load %arg3[%c0_20, %c0_21] : memref<128x512xbf16, #tpu.memory_space<vmem>>, vector<128x512xbf16>
    %cst_22 = arith.constant dense<0.000000e+00> : vector<8x512xf32>
    %40 = tpu.matmul %35, %39, %cst_22 {dimension_numbers = #tpu.dot_dimension_numbers<[1], [0], [0], [1], [0, 0, 1, 1], [], []>} : vector<8x128xbf16>, vector<128x512xbf16>, vector<8x512xf32> -> vector<8x512xf32>
    %41 = arith.extf %38 : vector<8x512xbf16> to vector<8x512xf32>
    %42 = arith.addf %41, %40 : vector<8x512xf32>
    %43 = vector.extract_strided_slice %42 {offsets = [0, 0], sizes = [8, 384], strides = [1, 1]} : vector<8x512xf32> to vector<8x384xf32>
    %44 = arith.negf %43 : vector<8x384xf32>
    %45 = math.exp %44 : vector<8x384xf32>
    %cst_23 = arith.constant 1.000000e+00 : f32
    %46 = vector.broadcast %cst_23 : f32 to vector<8x384xf32>
    %47 = arith.addf %46, %45 : vector<8x384xf32>
    %48 = arith.divf %46, %47 : vector<8x384xf32>
    %49 = vector.extract_strided_slice %42 {offsets = [0, 384], sizes = [8, 128], strides = [1, 1]} : vector<8x512xf32> to vector<8x128xf32>
    %50 = math.tanh %49 : vector<8x128xf32>
    %51 = vector.extract_strided_slice %48 {offsets = [0, 0], sizes = [8, 128], strides = [1, 1]} : vector<8x384xf32> to vector<8x128xf32>
    %52 = vector.extract_strided_slice %48 {offsets = [0, 128], sizes = [8, 128], strides = [1, 1]} : vector<8x384xf32> to vector<8x128xf32>
    %53 = vector.extract_strided_slice %48 {offsets = [0, 256], sizes = [8, 128], strides = [1, 1]} : vector<8x384xf32> to vector<8x128xf32>
    %c0_24 = arith.constant 0 : index
    %c0_25 = arith.constant 0 : index
    %54 = vector.load %arg6[%c0_24, %c0_25] : memref<8x128xf32, #tpu.memory_space<vmem>>, vector<8x128xf32>
    %55 = arith.mulf %52, %54 : vector<8x128xf32>
    %56 = arith.mulf %51, %50 : vector<8x128xf32>
    %57 = arith.addf %55, %56 : vector<8x128xf32>
    %58 = math.tanh %57 : vector<8x128xf32>
    %59 = arith.mulf %53, %58 : vector<8x128xf32>
    %c0_26 = arith.constant 0 : index
    %c0_27 = arith.constant 0 : index
    %60 = vector.load %arg6[%c0_26, %c0_27] : memref<8x128xf32, #tpu.memory_space<vmem>>, vector<8x128xf32>
    tpu.vector_store %arg6[%c0_26, %c0_27], %57 {strides = array<i32>} : memref<8x128xf32, #tpu.memory_space<vmem>>, vector<8x128xf32>,
    %61 = arith.truncf %59 : vector<8x128xf32> to vector<8x128xbf16>
    %c0_28 = arith.constant 0 : index
    %c0_29 = arith.constant 0 : index
    %62 = vector.load %arg5[%c0_28, %c0_29] : memref<8x128xbf16, #tpu.memory_space<vmem>>, vector<8x128xbf16>
    tpu.vector_store %arg5[%c0_28, %c0_29], %61 {strides = array<i32>} : memref<8x128xbf16, #tpu.memory_space<vmem>>, vector<8x128xbf16>,
    %63 = arith.index_cast %c1_i32 : i32 to index
    %c0_30 = arith.constant 0 : index
    %c0_31 = arith.constant 0 : index
    %64 = vector.load %arg4[%63, %c0_30, %c0_31] : memref<8x8x128xbf16, #tpu.memory_space<vmem>>, vector<1x8x128xbf16>
    %65 = vector.shape_cast %64 : vector<1x8x128xbf16> to vector<8x128xbf16>
    %66 = vector.shape_cast %61 : vector<8x128xbf16> to vector<1x8x128xbf16>
    tpu.vector_store %arg4[%63, %c0_30, %c0_31], %66 {strides = array<i32>} : memref<8x8x128xbf16, #tpu.memory_space<vmem>>, vector<1x8x128xbf16>,
    %c2_i32 = arith.constant 2 : i32
    %c0_32 = arith.constant 0 : index
    %c0_33 = arith.constant 0 : index
    %67 = vector.load %arg5[%c0_32, %c0_33] : memref<8x128xbf16, #tpu.memory_space<vmem>>, vector<8x128xbf16>
    %68 = arith.index_cast %c2_i32 : i32 to index
    %c0_34 = arith.constant 0 : index
    %c0_35 = arith.constant 0 : index
    %69 = vector.load %arg2[%68, %c0_34, %c0_35] : memref<8x8x512xbf16, #tpu.memory_space<vmem>>, vector<1x8x512xbf16>
    %70 = vector.shape_cast %69 : vector<1x8x512xbf16> to vector<8x512xbf16>
    %c0_36 = arith.constant 0 : index
    %c0_37 = arith.constant 0 : index
    %71 = vector.load %arg3[%c0_36, %c0_37] : memref<128x512xbf16, #tpu.memory_space<vmem>>, vector<128x512xbf16>
    %cst_38 = arith.constant dense<0.000000e+00> : vector<8x512xf32>
    %72 = tpu.matmul %67, %71, %cst_38 {dimension_numbers = #tpu.dot_dimension_numbers<[1], [0], [0], [1], [0, 0, 1, 1], [], []>} : vector<8x128xbf16>, vector<128x512xbf16>, vector<8x512xf32> -> vector<8x512xf32>
    %73 = arith.extf %70 : vector<8x512xbf16> to vector<8x512xf32>
    %74 = arith.addf %73, %72 : vector<8x512xf32>
    %75 = vector.extract_strided_slice %74 {offsets = [0, 0], sizes = [8, 384], strides = [1, 1]} : vector<8x512xf32> to vector<8x384xf32>
    %76 = arith.negf %75 : vector<8x384xf32>
    %77 = math.exp %76 : vector<8x384xf32>
    %cst_39 = arith.constant 1.000000e+00 : f32
    %78 = vector.broadcast %cst_39 : f32 to vector<8x384xf32>
    %79 = arith.addf %78, %77 : vector<8x384xf32>
    %80 = arith.divf %78, %79 : vector<8x384xf32>
    %81 = vector.extract_strided_slice %74 {offsets = [0, 384], sizes = [8, 128], strides = [1, 1]} : vector<8x512xf32> to vector<8x128xf32>
    %82 = math.tanh %81 : vector<8x128xf32>
    %83 = vector.extract_strided_slice %80 {offsets = [0, 0], sizes = [8, 128], strides = [1, 1]} : vector<8x384xf32> to vector<8x128xf32>
    %84 = vector.extract_strided_slice %80 {offsets = [0, 128], sizes = [8, 128], strides = [1, 1]} : vector<8x384xf32> to vector<8x128xf32>
    %85 = vector.extract_strided_slice %80 {offsets = [0, 256], sizes = [8, 128], strides = [1, 1]} : vector<8x384xf32> to vector<8x128xf32>
    %c0_40 = arith.constant 0 : index
    %c0_41 = arith.constant 0 : index
    %86 = vector.load %arg6[%c0_40, %c0_41] : memref<8x128xf32, #tpu.memory_space<vmem>>, vector<8x128xf32>
    %87 = arith.mulf %84, %86 : vector<8x128xf32>
    %88 = arith.mulf %83, %82 : vector<8x128xf32>
    %89 = arith.addf %87, %88 : vector<8x128xf32>
    %90 = math.tanh %89 : vector<8x128xf32>
    %91 = arith.mulf %85, %90 : vector<8x128xf32>
    %c0_42 = arith.constant 0 : index
    %c0_43 = arith.constant 0 : index
    %92 = vector.load %arg6[%c0_42, %c0_43] : memref<8x128xf32, #tpu.memory_space<vmem>>, vector<8x128xf32>
    tpu.vector_store %arg6[%c0_42, %c0_43], %89 {strides = array<i32>} : memref<8x128xf32, #tpu.memory_space<vmem>>, vector<8x128xf32>,
    %93 = arith.truncf %91 : vector<8x128xf32> to vector<8x128xbf16>
    %c0_44 = arith.constant 0 : index
    %c0_45 = arith.constant 0 : index
    %94 = vector.load %arg5[%c0_44, %c0_45] : memref<8x128xbf16, #tpu.memory_space<vmem>>, vector<8x128xbf16>
    tpu.vector_store %arg5[%c0_44, %c0_45], %93 {strides = array<i32>} : memref<8x128xbf16, #tpu.memory_space<vmem>>, vector<8x128xbf16>,
    %95 = arith.index_cast %c2_i32 : i32 to index
    %c0_46 = arith.constant 0 : index
    %c0_47 = arith.constant 0 : index
    %96 = vector.load %arg4[%95, %c0_46, %c0_47] : memref<8x8x128xbf16, #tpu.memory_space<vmem>>, vector<1x8x128xbf16>
    %97 = vector.shape_cast %96 : vector<1x8x128xbf16> to vector<8x128xbf16>
    %98 = vector.shape_cast %93 : vector<8x128xbf16> to vector<1x8x128xbf16>
    tpu.vector_store %arg4[%95, %c0_46, %c0_47], %98 {strides = array<i32>} : memref<8x8x128xbf16, #tpu.memory_space<vmem>>, vector<1x8x128xbf16>,
    %c3_i32 = arith.constant 3 : i32
    %c0_48 = arith.constant 0 : index
    %c0_49 = arith.constant 0 : index
    %99 = vector.load %arg5[%c0_48, %c0_49] : memref<8x128xbf16, #tpu.memory_space<vmem>>, vector<8x128xbf16>
    %100 = arith.index_cast %c3_i32 : i32 to index
    %c0_50 = arith.constant 0 : index
    %c0_51 = arith.constant 0 : index
    %101 = vector.load %arg2[%100, %c0_50, %c0_51] : memref<8x8x512xbf16, #tpu.memory_space<vmem>>, vector<1x8x512xbf16>
    %102 = vector.shape_cast %101 : vector<1x8x512xbf16> to vector<8x512xbf16>
    %c0_52 = arith.constant 0 : index
    %c0_53 = arith.constant 0 : index
    %103 = vector.load %arg3[%c0_52, %c0_53] : memref<128x512xbf16, #tpu.memory_space<vmem>>, vector<128x512xbf16>
    %cst_54 = arith.constant dense<0.000000e+00> : vector<8x512xf32>
    %104 = tpu.matmul %99, %103, %cst_54 {dimension_numbers = #tpu.dot_dimension_numbers<[1], [0], [0], [1], [0, 0, 1, 1], [], []>} : vector<8x128xbf16>, vector<128x512xbf16>, vector<8x512xf32> -> vector<8x512xf32>
    %105 = arith.extf %102 : vector<8x512xbf16> to vector<8x512xf32>
    %106 = arith.addf %105, %104 : vector<8x512xf32>
    %107 = vector.extract_strided_slice %106 {offsets = [0, 0], sizes = [8, 384], strides = [1, 1]} : vector<8x512xf32> to vector<8x384xf32>
    %108 = arith.negf %107 : vector<8x384xf32>
    %109 = math.exp %108 : vector<8x384xf32>
    %cst_55 = arith.constant 1.000000e+00 : f32
    %110 = vector.broadcast %cst_55 : f32 to vector<8x384xf32>
    %111 = arith.addf %110, %109 : vector<8x384xf32>
    %112 = arith.divf %110, %111 : vector<8x384xf32>
    %113 = vector.extract_strided_slice %106 {offsets = [0, 384], sizes = [8, 128], strides = [1, 1]} : vector<8x512xf32> to vector<8x128xf32>
    %114 = math.tanh %113 : vector<8x128xf32>
    %115 = vector.extract_strided_slice %112 {offsets = [0, 0], sizes = [8, 128], strides = [1, 1]} : vector<8x384xf32> to vector<8x128xf32>
    %116 = vector.extract_strided_slice %112 {offsets = [0, 128], sizes = [8, 128], strides = [1, 1]} : vector<8x384xf32> to vector<8x128xf32>
    %117 = vector.extract_strided_slice %112 {offsets = [0, 256], sizes = [8, 128], strides = [1, 1]} : vector<8x384xf32> to vector<8x128xf32>
    %c0_56 = arith.constant 0 : index
    %c0_57 = arith.constant 0 : index
    %118 = vector.load %arg6[%c0_56, %c0_57] : memref<8x128xf32, #tpu.memory_space<vmem>>, vector<8x128xf32>
    %119 = arith.mulf %116, %118 : vector<8x128xf32>
    %120 = arith.mulf %115, %114 : vector<8x128xf32>
    %121 = arith.addf %119, %120 : vector<8x128xf32>
    %122 = math.tanh %121 : vector<8x128xf32>
    %123 = arith.mulf %117, %122 : vector<8x128xf32>
    %c0_58 = arith.constant 0 : index
    %c0_59 = arith.constant 0 : index
    %124 = vector.load %arg6[%c0_58, %c0_59] : memref<8x128xf32, #tpu.memory_space<vmem>>, vector<8x128xf32>
    tpu.vector_store %arg6[%c0_58, %c0_59], %121 {strides = array<i32>} : memref<8x128xf32, #tpu.memory_space<vmem>>, vector<8x128xf32>,
    %125 = arith.truncf %123 : vector<8x128xf32> to vector<8x128xbf16>
    %c0_60 = arith.constant 0 : index
    %c0_61 = arith.constant 0 : index
    %126 = vector.load %arg5[%c0_60, %c0_61] : memref<8x128xbf16, #tpu.memory_space<vmem>>, vector<8x128xbf16>
    tpu.vector_store %arg5[%c0_60, %c0_61], %125 {strides = array<i32>} : memref<8x128xbf16, #tpu.memory_space<vmem>>, vector<8x128xbf16>,
    %127 = arith.index_cast %c3_i32 : i32 to index
    %c0_62 = arith.constant 0 : index
    %c0_63 = arith.constant 0 : index
    %128 = vector.load %arg4[%127, %c0_62, %c0_63] : memref<8x8x128xbf16, #tpu.memory_space<vmem>>, vector<1x8x128xbf16>
    %129 = vector.shape_cast %128 : vector<1x8x128xbf16> to vector<8x128xbf16>
    %130 = vector.shape_cast %125 : vector<8x128xbf16> to vector<1x8x128xbf16>
    tpu.vector_store %arg4[%127, %c0_62, %c0_63], %130 {strides = array<i32>} : memref<8x8x128xbf16, #tpu.memory_space<vmem>>, vector<1x8x128xbf16>,
    %c4_i32 = arith.constant 4 : i32
    %c0_64 = arith.constant 0 : index
    %c0_65 = arith.constant 0 : index
    %131 = vector.load %arg5[%c0_64, %c0_65] : memref<8x128xbf16, #tpu.memory_space<vmem>>, vector<8x128xbf16>
    %132 = arith.index_cast %c4_i32 : i32 to index
    %c0_66 = arith.constant 0 : index
    %c0_67 = arith.constant 0 : index
    %133 = vector.load %arg2[%132, %c0_66, %c0_67] : memref<8x8x512xbf16, #tpu.memory_space<vmem>>, vector<1x8x512xbf16>
    %134 = vector.shape_cast %133 : vector<1x8x512xbf16> to vector<8x512xbf16>
    %c0_68 = arith.constant 0 : index
    %c0_69 = arith.constant 0 : index
    %135 = vector.load %arg3[%c0_68, %c0_69] : memref<128x512xbf16, #tpu.memory_space<vmem>>, vector<128x512xbf16>
    %cst_70 = arith.constant dense<0.000000e+00> : vector<8x512xf32>
    %136 = tpu.matmul %131, %135, %cst_70 {dimension_numbers = #tpu.dot_dimension_numbers<[1], [0], [0], [1], [0, 0, 1, 1], [], []>} : vector<8x128xbf16>, vector<128x512xbf16>, vector<8x512xf32> -> vector<8x512xf32>
    %137 = arith.extf %134 : vector<8x512xbf16> to vector<8x512xf32>
    %138 = arith.addf %137, %136 : vector<8x512xf32>
    %139 = vector.extract_strided_slice %138 {offsets = [0, 0], sizes = [8, 384], strides = [1, 1]} : vector<8x512xf32> to vector<8x384xf32>
    %140 = arith.negf %139 : vector<8x384xf32>
    %141 = math.exp %140 : vector<8x384xf32>
    %cst_71 = arith.constant 1.000000e+00 : f32
    %142 = vector.broadcast %cst_71 : f32 to vector<8x384xf32>
    %143 = arith.addf %142, %141 : vector<8x384xf32>
    %144 = arith.divf %142, %143 : vector<8x384xf32>
    %145 = vector.extract_strided_slice %138 {offsets = [0, 384], sizes = [8, 128], strides = [1, 1]} : vector<8x512xf32> to vector<8x128xf32>
    %146 = math.tanh %145 : vector<8x128xf32>
    %147 = vector.extract_strided_slice %144 {offsets = [0, 0], sizes = [8, 128], strides = [1, 1]} : vector<8x384xf32> to vector<8x128xf32>
    %148 = vector.extract_strided_slice %144 {offsets = [0, 128], sizes = [8, 128], strides = [1, 1]} : vector<8x384xf32> to vector<8x128xf32>
    %149 = vector.extract_strided_slice %144 {offsets = [0, 256], sizes = [8, 128], strides = [1, 1]} : vector<8x384xf32> to vector<8x128xf32>
    %c0_72 = arith.constant 0 : index
    %c0_73 = arith.constant 0 : index
    %150 = vector.load %arg6[%c0_72, %c0_73] : memref<8x128xf32, #tpu.memory_space<vmem>>, vector<8x128xf32>
    %151 = arith.mulf %148, %150 : vector<8x128xf32>
    %152 = arith.mulf %147, %146 : vector<8x128xf32>
    %153 = arith.addf %151, %152 : vector<8x128xf32>
    %154 = math.tanh %153 : vector<8x128xf32>
    %155 = arith.mulf %149, %154 : vector<8x128xf32>
    %c0_74 = arith.constant 0 : index
    %c0_75 = arith.constant 0 : index
    %156 = vector.load %arg6[%c0_74, %c0_75] : memref<8x128xf32, #tpu.memory_space<vmem>>, vector<8x128xf32>
    tpu.vector_store %arg6[%c0_74, %c0_75], %153 {strides = array<i32>} : memref<8x128xf32, #tpu.memory_space<vmem>>, vector<8x128xf32>,
    %157 = arith.truncf %155 : vector<8x128xf32> to vector<8x128xbf16>
    %c0_76 = arith.constant 0 : index
    %c0_77 = arith.constant 0 : index
    %158 = vector.load %arg5[%c0_76, %c0_77] : memref<8x128xbf16, #tpu.memory_space<vmem>>, vector<8x128xbf16>
    tpu.vector_store %arg5[%c0_76, %c0_77], %157 {strides = array<i32>} : memref<8x128xbf16, #tpu.memory_space<vmem>>, vector<8x128xbf16>,
    %159 = arith.index_cast %c4_i32 : i32 to index
    %c0_78 = arith.constant 0 : index
    %c0_79 = arith.constant 0 : index
    %160 = vector.load %arg4[%159, %c0_78, %c0_79] : memref<8x8x128xbf16, #tpu.memory_space<vmem>>, vector<1x8x128xbf16>
    %161 = vector.shape_cast %160 : vector<1x8x128xbf16> to vector<8x128xbf16>
    %162 = vector.shape_cast %157 : vector<8x128xbf16> to vector<1x8x128xbf16>
    tpu.vector_store %arg4[%159, %c0_78, %c0_79], %162 {strides = array<i32>} : memref<8x8x128xbf16, #tpu.memory_space<vmem>>, vector<1x8x128xbf16>,
    %c5_i32 = arith.constant 5 : i32
    %c0_80 = arith.constant 0 : index
    %c0_81 = arith.constant 0 : index
    %163 = vector.load %arg5[%c0_80, %c0_81] : memref<8x128xbf16, #tpu.memory_space<vmem>>, vector<8x128xbf16>
    %164 = arith.index_cast %c5_i32 : i32 to index
    %c0_82 = arith.constant 0 : index
    %c0_83 = arith.constant 0 : index
    %165 = vector.load %arg2[%164, %c0_82, %c0_83] : memref<8x8x512xbf16, #tpu.memory_space<vmem>>, vector<1x8x512xbf16>
    %166 = vector.shape_cast %165 : vector<1x8x512xbf16> to vector<8x512xbf16>
    %c0_84 = arith.constant 0 : index
    %c0_85 = arith.constant 0 : index
    %167 = vector.load %arg3[%c0_84, %c0_85] : memref<128x512xbf16, #tpu.memory_space<vmem>>, vector<128x512xbf16>
    %cst_86 = arith.constant dense<0.000000e+00> : vector<8x512xf32>
    %168 = tpu.matmul %163, %167, %cst_86 {dimension_numbers = #tpu.dot_dimension_numbers<[1], [0], [0], [1], [0, 0, 1, 1], [], []>} : vector<8x128xbf16>, vector<128x512xbf16>, vector<8x512xf32> -> vector<8x512xf32>
    %169 = arith.extf %166 : vector<8x512xbf16> to vector<8x512xf32>
    %170 = arith.addf %169, %168 : vector<8x512xf32>
    %171 = vector.extract_strided_slice %170 {offsets = [0, 0], sizes = [8, 384], strides = [1, 1]} : vector<8x512xf32> to vector<8x384xf32>
    %172 = arith.negf %171 : vector<8x384xf32>
    %173 = math.exp %172 : vector<8x384xf32>
    %cst_87 = arith.constant 1.000000e+00 : f32
    %174 = vector.broadcast %cst_87 : f32 to vector<8x384xf32>
    %175 = arith.addf %174, %173 : vector<8x384xf32>
    %176 = arith.divf %174, %175 : vector<8x384xf32>
    %177 = vector.extract_strided_slice %170 {offsets = [0, 384], sizes = [8, 128], strides = [1, 1]} : vector<8x512xf32> to vector<8x128xf32>
    %178 = math.tanh %177 : vector<8x128xf32>
    %179 = vector.extract_strided_slice %176 {offsets = [0, 0], sizes = [8, 128], strides = [1, 1]} : vector<8x384xf32> to vector<8x128xf32>
    %180 = vector.extract_strided_slice %176 {offsets = [0, 128], sizes = [8, 128], strides = [1, 1]} : vector<8x384xf32> to vector<8x128xf32>
    %181 = vector.extract_strided_slice %176 {offsets = [0, 256], sizes = [8, 128], strides = [1, 1]} : vector<8x384xf32> to vector<8x128xf32>
    %c0_88 = arith.constant 0 : index
    %c0_89 = arith.constant 0 : index
    %182 = vector.load %arg6[%c0_88, %c0_89] : memref<8x128xf32, #tpu.memory_space<vmem>>, vector<8x128xf32>
    %183 = arith.mulf %180, %182 : vector<8x128xf32>
    %184 = arith.mulf %179, %178 : vector<8x128xf32>
    %185 = arith.addf %183, %184 : vector<8x128xf32>
    %186 = math.tanh %185 : vector<8x128xf32>
    %187 = arith.mulf %181, %186 : vector<8x128xf32>
    %c0_90 = arith.constant 0 : index
    %c0_91 = arith.constant 0 : index
    %188 = vector.load %arg6[%c0_90, %c0_91] : memref<8x128xf32, #tpu.memory_space<vmem>>, vector<8x128xf32>
    tpu.vector_store %arg6[%c0_90, %c0_91], %185 {strides = array<i32>} : memref<8x128xf32, #tpu.memory_space<vmem>>, vector<8x128xf32>,
    %189 = arith.truncf %187 : vector<8x128xf32> to vector<8x128xbf16>
    %c0_92 = arith.constant 0 : index
    %c0_93 = arith.constant 0 : index
    %190 = vector.load %arg5[%c0_92, %c0_93] : memref<8x128xbf16, #tpu.memory_space<vmem>>, vector<8x128xbf16>
    tpu.vector_store %arg5[%c0_92, %c0_93], %189 {strides = array<i32>} : memref<8x128xbf16, #tpu.memory_space<vmem>>, vector<8x128xbf16>,
    %191 = arith.index_cast %c5_i32 : i32 to index
    %c0_94 = arith.constant 0 : index
    %c0_95 = arith.constant 0 : index
    %192 = vector.load %arg4[%191, %c0_94, %c0_95] : memref<8x8x128xbf16, #tpu.memory_space<vmem>>, vector<1x8x128xbf16>
    %193 = vector.shape_cast %192 : vector<1x8x128xbf16> to vector<8x128xbf16>
    %194 = vector.shape_cast %189 : vector<8x128xbf16> to vector<1x8x128xbf16>
    tpu.vector_store %arg4[%191, %c0_94, %c0_95], %194 {strides = array<i32>} : memref<8x8x128xbf16, #tpu.memory_space<vmem>>, vector<1x8x128xbf16>,
    %c6_i32 = arith.constant 6 : i32
    %c0_96 = arith.constant 0 : index
    %c0_97 = arith.constant 0 : index
    %195 = vector.load %arg5[%c0_96, %c0_97] : memref<8x128xbf16, #tpu.memory_space<vmem>>, vector<8x128xbf16>
    %196 = arith.index_cast %c6_i32 : i32 to index
    %c0_98 = arith.constant 0 : index
    %c0_99 = arith.constant 0 : index
    %197 = vector.load %arg2[%196, %c0_98, %c0_99] : memref<8x8x512xbf16, #tpu.memory_space<vmem>>, vector<1x8x512xbf16>
    %198 = vector.shape_cast %197 : vector<1x8x512xbf16> to vector<8x512xbf16>
    %c0_100 = arith.constant 0 : index
    %c0_101 = arith.constant 0 : index
    %199 = vector.load %arg3[%c0_100, %c0_101] : memref<128x512xbf16, #tpu.memory_space<vmem>>, vector<128x512xbf16>
    %cst_102 = arith.constant dense<0.000000e+00> : vector<8x512xf32>
    %200 = tpu.matmul %195, %199, %cst_102 {dimension_numbers = #tpu.dot_dimension_numbers<[1], [0], [0], [1], [0, 0, 1, 1], [], []>} : vector<8x128xbf16>, vector<128x512xbf16>, vector<8x512xf32> -> vector<8x512xf32>
    %201 = arith.extf %198 : vector<8x512xbf16> to vector<8x512xf32>
    %202 = arith.addf %201, %200 : vector<8x512xf32>
    %203 = vector.extract_strided_slice %202 {offsets = [0, 0], sizes = [8, 384], strides = [1, 1]} : vector<8x512xf32> to vector<8x384xf32>
    %204 = arith.negf %203 : vector<8x384xf32>
    %205 = math.exp %204 : vector<8x384xf32>
    %cst_103 = arith.constant 1.000000e+00 : f32
    %206 = vector.broadcast %cst_103 : f32 to vector<8x384xf32>
    %207 = arith.addf %206, %205 : vector<8x384xf32>
    %208 = arith.divf %206, %207 : vector<8x384xf32>
    %209 = vector.extract_strided_slice %202 {offsets = [0, 384], sizes = [8, 128], strides = [1, 1]} : vector<8x512xf32> to vector<8x128xf32>
    %210 = math.tanh %209 : vector<8x128xf32>
    %211 = vector.extract_strided_slice %208 {offsets = [0, 0], sizes = [8, 128], strides = [1, 1]} : vector<8x384xf32> to vector<8x128xf32>
    %212 = vector.extract_strided_slice %208 {offsets = [0, 128], sizes = [8, 128], strides = [1, 1]} : vector<8x384xf32> to vector<8x128xf32>
    %213 = vector.extract_strided_slice %208 {offsets = [0, 256], sizes = [8, 128], strides = [1, 1]} : vector<8x384xf32> to vector<8x128xf32>
    %c0_104 = arith.constant 0 : index
    %c0_105 = arith.constant 0 : index
    %214 = vector.load %arg6[%c0_104, %c0_105] : memref<8x128xf32, #tpu.memory_space<vmem>>, vector<8x128xf32>
    %215 = arith.mulf %212, %214 : vector<8x128xf32>
    %216 = arith.mulf %211, %210 : vector<8x128xf32>
    %217 = arith.addf %215, %216 : vector<8x128xf32>
    %218 = math.tanh %217 : vector<8x128xf32>
    %219 = arith.mulf %213, %218 : vector<8x128xf32>
    %c0_106 = arith.constant 0 : index
    %c0_107 = arith.constant 0 : index
    %220 = vector.load %arg6[%c0_106, %c0_107] : memref<8x128xf32, #tpu.memory_space<vmem>>, vector<8x128xf32>
    tpu.vector_store %arg6[%c0_106, %c0_107], %217 {strides = array<i32>} : memref<8x128xf32, #tpu.memory_space<vmem>>, vector<8x128xf32>,
    %221 = arith.truncf %219 : vector<8x128xf32> to vector<8x128xbf16>
    %c0_108 = arith.constant 0 : index
    %c0_109 = arith.constant 0 : index
    %222 = vector.load %arg5[%c0_108, %c0_109] : memref<8x128xbf16, #tpu.memory_space<vmem>>, vector<8x128xbf16>
    tpu.vector_store %arg5[%c0_108, %c0_109], %221 {strides = array<i32>} : memref<8x128xbf16, #tpu.memory_space<vmem>>, vector<8x128xbf16>,
    %223 = arith.index_cast %c6_i32 : i32 to index
    %c0_110 = arith.constant 0 : index
    %c0_111 = arith.constant 0 : index
    %224 = vector.load %arg4[%223, %c0_110, %c0_111] : memref<8x8x128xbf16, #tpu.memory_space<vmem>>, vector<1x8x128xbf16>
    %225 = vector.shape_cast %224 : vector<1x8x128xbf16> to vector<8x128xbf16>
    %226 = vector.shape_cast %221 : vector<8x128xbf16> to vector<1x8x128xbf16>
    tpu.vector_store %arg4[%223, %c0_110, %c0_111], %226 {strides = array<i32>} : memref<8x8x128xbf16, #tpu.memory_space<vmem>>, vector<1x8x128xbf16>,
    %c7_i32 = arith.constant 7 : i32
    %c0_112 = arith.constant 0 : index
    %c0_113 = arith.constant 0 : index
    %227 = vector.load %arg5[%c0_112, %c0_113] : memref<8x128xbf16, #tpu.memory_space<vmem>>, vector<8x128xbf16>
    %228 = arith.index_cast %c7_i32 : i32 to index
    %c0_114 = arith.constant 0 : index
    %c0_115 = arith.constant 0 : index
    %229 = vector.load %arg2[%228, %c0_114, %c0_115] : memref<8x8x512xbf16, #tpu.memory_space<vmem>>, vector<1x8x512xbf16>
    %230 = vector.shape_cast %229 : vector<1x8x512xbf16> to vector<8x512xbf16>
    %c0_116 = arith.constant 0 : index
    %c0_117 = arith.constant 0 : index
    %231 = vector.load %arg3[%c0_116, %c0_117] : memref<128x512xbf16, #tpu.memory_space<vmem>>, vector<128x512xbf16>
    %cst_118 = arith.constant dense<0.000000e+00> : vector<8x512xf32>
    %232 = tpu.matmul %227, %231, %cst_118 {dimension_numbers = #tpu.dot_dimension_numbers<[1], [0], [0], [1], [0, 0, 1, 1], [], []>} : vector<8x128xbf16>, vector<128x512xbf16>, vector<8x512xf32> -> vector<8x512xf32>
    %233 = arith.extf %230 : vector<8x512xbf16> to vector<8x512xf32>
    %234 = arith.addf %233, %232 : vector<8x512xf32>
    %235 = vector.extract_strided_slice %234 {offsets = [0, 0], sizes = [8, 384], strides = [1, 1]} : vector<8x512xf32> to vector<8x384xf32>
    %236 = arith.negf %235 : vector<8x384xf32>
    %237 = math.exp %236 : vector<8x384xf32>
    %cst_119 = arith.constant 1.000000e+00 : f32
    %238 = vector.broadcast %cst_119 : f32 to vector<8x384xf32>
    %239 = arith.addf %238, %237 : vector<8x384xf32>
    %240 = arith.divf %238, %239 : vector<8x384xf32>
    %241 = vector.extract_strided_slice %234 {offsets = [0, 384], sizes = [8, 128], strides = [1, 1]} : vector<8x512xf32> to vector<8x128xf32>
    %242 = math.tanh %241 : vector<8x128xf32>
    %243 = vector.extract_strided_slice %240 {offsets = [0, 0], sizes = [8, 128], strides = [1, 1]} : vector<8x384xf32> to vector<8x128xf32>
    %244 = vector.extract_strided_slice %240 {offsets = [0, 128], sizes = [8, 128], strides = [1, 1]} : vector<8x384xf32> to vector<8x128xf32>
    %245 = vector.extract_strided_slice %240 {offsets = [0, 256], sizes = [8, 128], strides = [1, 1]} : vector<8x384xf32> to vector<8x128xf32>
    %c0_120 = arith.constant 0 : index
    %c0_121 = arith.constant 0 : index
    %246 = vector.load %arg6[%c0_120, %c0_121] : memref<8x128xf32, #tpu.memory_space<vmem>>, vector<8x128xf32>
    %247 = arith.mulf %244, %246 : vector<8x128xf32>
    %248 = arith.mulf %243, %242 : vector<8x128xf32>
    %249 = arith.addf %247, %248 : vector<8x128xf32>
    %250 = math.tanh %249 : vector<8x128xf32>
    %251 = arith.mulf %245, %250 : vector<8x128xf32>
    %c0_122 = arith.constant 0 : index
    %c0_123 = arith.constant 0 : index
    %252 = vector.load %arg6[%c0_122, %c0_123] : memref<8x128xf32, #tpu.memory_space<vmem>>, vector<8x128xf32>
    tpu.vector_store %arg6[%c0_122, %c0_123], %249 {strides = array<i32>} : memref<8x128xf32, #tpu.memory_space<vmem>>, vector<8x128xf32>,
    %253 = arith.truncf %251 : vector<8x128xf32> to vector<8x128xbf16>
    %c0_124 = arith.constant 0 : index
    %c0_125 = arith.constant 0 : index
    %254 = vector.load %arg5[%c0_124, %c0_125] : memref<8x128xbf16, #tpu.memory_space<vmem>>, vector<8x128xbf16>
    tpu.vector_store %arg5[%c0_124, %c0_125], %253 {strides = array<i32>} : memref<8x128xbf16, #tpu.memory_space<vmem>>, vector<8x128xbf16>,
    %255 = arith.index_cast %c7_i32 : i32 to index
    %c0_126 = arith.constant 0 : index
    %c0_127 = arith.constant 0 : index
    %256 = vector.load %arg4[%255, %c0_126, %c0_127] : memref<8x8x128xbf16, #tpu.memory_space<vmem>>, vector<1x8x128xbf16>
    %257 = vector.shape_cast %256 : vector<1x8x128xbf16> to vector<8x128xbf16>
    %258 = vector.shape_cast %253 : vector<8x128xbf16> to vector<1x8x128xbf16>
    tpu.vector_store %arg4[%255, %c0_126, %c0_127], %258 {strides = array<i32>} : memref<8x8x128xbf16, #tpu.memory_space<vmem>>, vector<1x8x128xbf16>,
    %c8_i32 = arith.constant 8 : i32
    return
  }
  func.func @transform_0(%arg0: i32, %arg1: i32) -> (i32, i32, i32) {
    %c0_i32 = arith.constant 0 : i32
    %c0_i32_0 = arith.constant 0 : i32
    return %arg1, %arg0, %c0_i32 : i32, i32, i32
  }
  func.func @transform_1(%arg0: i32, %arg1: i32) -> (i32, i32) {
    %c0_i32 = arith.constant 0 : i32
    %c0_i32_0 = arith.constant 0 : i32
    %c0_i32_1 = arith.constant 0 : i32
    return %c0_i32, %c0_i32_0 : i32, i32
  }
  func.func @transform_2(%arg0: i32, %arg1: i32) -> (i32, i32, i32) {
    %c0_i32 = arith.constant 0 : i32
    %c0_i32_0 = arith.constant 0 : i32
    return %arg1, %arg0, %c0_i32 : i32, i32, i32
  }
}

</mosaic_0001>

<llo_original>
// kernel: bilstm_forward.1
$region0: #{bilstm_forward.1}
  #allocation0 [shape = 'u32[]', space=smem, size = 0x4, offset = 0x4, fixed_abs, tag = 'smem constant byte address 0x4 - core index']
  #allocation1 [shape = 'u32[144,128]{1,0:T(1,128)}', space=vmem, size = 0x12000, scoped, tag = 'internal scratch']
  #allocation2 [shape = 'bf16[8,128]{1,0:T(8,128)(2,1)}', space=vmem, size = 0x800, scoped, tag = 'scratch operand']
  #allocation3 [shape = 'f32[8,128]{1,0:T(8,128)}', space=vmem, size = 0x1000, scoped, tag = 'scratch operand']
  %s0 = inlined_call_operand.vmem [shape: bf16[8,8,512], index: 0, kind: input, shape index: {}]
  %s1 = inlined_call_operand.vmem [shape: bf16[128,512], index: 1, kind: input, shape index: {}]
  %s2 = inlined_call_operand.vmem [shape: bf16[8,8,128], index: 2, kind: output, shape index: {}]
  %s3 = sld [smem:[#allocation0]]
  $region22: #{bilstm_forward.1} parent=0
    _
  %s5 = ssub.s32 1, %s3
  %s6 = scalar_select 0, %s5, %s3
  // Predicated region
  $region2: #{bilstm_forward.1} parent=0 // pred_check
    _
  $region3: #{bilstm_forward.1} parent=0 // pred_check_branch
    %8 = sbr.rel (0) target = $region5
  $region4: #{bilstm_forward.1} parent=0 // pred_region
    _
  $region5: #{bilstm_forward.1} parent=0 // pred_fallthru
    _
  // Predicated region
  $region6: #{bilstm_forward.1} parent=0 // pred_check
    _
  $region7: #{bilstm_forward.1} parent=0 // pred_check_branch
    %10 = sbr.rel (0) target = $region9
  $region8: #{bilstm_forward.1} parent=0 // pred_region
    _
  $region9: #{bilstm_forward.1} parent=0 // pred_fallthru
    _
  %p12 = scmp.eq.s32.totalorder 0, 0
  // Predicated region
  $region10: #{bilstm_forward.1} parent=0 // pred_check
    %p13 = pneg %p12
  $region11: #{bilstm_forward.1} parent=0 // pred_check_branch
    %15 = sbr.rel (%p13) target = $region13
  $region12: #{bilstm_forward.1} parent=0 // pred_region
    %16 = vst [vmem:[#allocation2] sm:$0xf] 0
    %17 = vst [vmem:[#allocation3] sm:$0xff] 0.0
  $region13: #{bilstm_forward.1} parent=0 // pred_fallthru
    _
  %v18 = vld [vmem:[#allocation2] sm:$0xf]
  %v19 = vld [vmem:[%s0] sm:$0xff]
  %v20 = vld [vmem:[%s0 + $0x8] sm:$0xff]
  %v21 = vld [vmem:[%s1] sm:$0xff]
  %v22 = vld [vmem:[%s1 + $0x8] sm:$0xff]
  %v23 = vld [vmem:[%s1 + $0x10] sm:$0xff]
  %v24 = vld [vmem:[%s1 + $0x18] sm:$0xff]
  %v25 = vld [vmem:[%s1 + $0x20] sm:$0xff]
  %v26 = vld [vmem:[%s1 + $0x28] sm:$0xff]
  %v27 = vld [vmem:[%s1 + $0x30] sm:$0xff]
  %v28 = vld [vmem:[%s1 + $0x38] sm:$0xff]
  %v29 = vld [vmem:[%s1 + $0x40] sm:$0xff]
  %v30 = vld [vmem:[%s1 + $0x48] sm:$0xff]
  %v31 = vld [vmem:[%s1 + $0x50] sm:$0xff]
  %v32 = vld [vmem:[%s1 + $0x58] sm:$0xff]
  %v33 = vld [vmem:[%s1 + $0x60] sm:$0xff]
  %v34 = vld [vmem:[%s1 + $0x68] sm:$0xff]
  %v35 = vld [vmem:[%s1 + $0x70] sm:$0xff]
  %v36 = vld [vmem:[%s1 + $0x78] sm:$0xff]
  %v37 = vld [vmem:[%s1 + $0x80] sm:$0xff]
  %v38 = vld [vmem:[%s1 + $0x88] sm:$0xff]
  %v39 = vld [vmem:[%s1 + $0x90] sm:$0xff]
  %v40 = vld [vmem:[%s1 + $0x98] sm:$0xff]
  %v41 = vld [vmem:[%s1 + $0xa0] sm:$0xff]
  %v42 = vld [vmem:[%s1 + $0xa8] sm:$0xff]
  %v43 = vld [vmem:[%s1 + $0xb0] sm:$0xff]
  %v44 = vld [vmem:[%s1 + $0xb8] sm:$0xff]
  %v45 = vld [vmem:[%s1 + $0xc0] sm:$0xff]
  %v46 = vld [vmem:[%s1 + $0xc8] sm:$0xff]
  %v47 = vld [vmem:[%s1 + $0xd0] sm:$0xff]
  %v48 = vld [vmem:[%s1 + $0xd8] sm:$0xff]
  %v49 = vld [vmem:[%s1 + $0xe0] sm:$0xff]
  %v50 = vld [vmem:[%s1 + $0xe8] sm:$0xff]
  %v51 = vld [vmem:[%s1 + $0xf0] sm:$0xff]
  %v52 = vld [vmem:[%s1 + $0xf8] sm:$0xff]
  %v85 = vunpack.c.l.b16 %v21
  %v86 = vunpack.c.h.b16 %v21
  %v87 = vunpack.c.l.b16 %v22
  %v88 = vunpack.c.h.b16 %v22
  %v89 = vunpack.c.l.b16 %v23
  %v90 = vunpack.c.h.b16 %v23
  %v91 = vunpack.c.l.b16 %v24
  %v92 = vunpack.c.h.b16 %v24
  %v93 = vunpack.c.l.b16 %v25
  %v94 = vunpack.c.h.b16 %v25
  %v95 = vunpack.c.l.b16 %v26
  %v96 = vunpack.c.h.b16 %v26
  %v97 = vunpack.c.l.b16 %v27
  %v98 = vunpack.c.h.b16 %v27
  %v99 = vunpack.c.l.b16 %v28
  %v100 = vunpack.c.h.b16 %v28
  %v101 = vunpack.c.l.b16 %v29
  %v102 = vunpack.c.h.b16 %v29
  %v103 = vunpack.c.l.b16 %v30
  %v104 = vunpack.c.h.b16 %v30
  %v105 = vunpack.c.l.b16 %v31
  %v106 = vunpack.c.h.b16 %v31
  %v107 = vunpack.c.l.b16 %v32
  %v108 = vunpack.c.h.b16 %v32
  %v109 = vunpack.c.l.b16 %v33
  %v110 = vunpack.c.h.b16 %v33
  %v111 = vunpack.c.l.b16 %v34
  %v112 = vunpack.c.h.b16 %v34
  %v113 = vunpack.c.l.b16 %v35
  %v114 = vunpack.c.h.b16 %v35
  %v115 = vunpack.c.l.b16 %v36
  %v116 = vunpack.c.h.b16 %v36
  %v117 = vunpack.c.l.b16 %v37
  %v118 = vunpack.c.h.b16 %v37
  %v119 = vunpack.c.l.b16 %v38
  %v120 = vunpack.c.h.b16 %v38
  %v121 = vunpack.c.l.b16 %v39
  %v122 = vunpack.c.h.b16 %v39
  %v123 = vunpack.c.l.b16 %v40
  %v124 = vunpack.c.h.b16 %v40
  %v125 = vunpack.c.l.b16 %v41
  %v126 = vunpack.c.h.b16 %v41
  %v127 = vunpack.c.l.b16 %v42
  %v128 = vunpack.c.h.b16 %v42
  %v129 = vunpack.c.l.b16 %v43
  %v130 = vunpack.c.h.b16 %v43
  %v131 = vunpack.c.l.b16 %v44
  %v132 = vunpack.c.h.b16 %v44
  %v133 = vunpack.c.l.b16 %v45
  %v134 = vunpack.c.h.b16 %v45
  %v135 = vunpack.c.l.b16 %v46
  %v136 = vunpack.c.h.b16 %v46
  %v137 = vunpack.c.l.b16 %v47
  %v138 = vunpack.c.h.b16 %v47
  %v139 = vunpack.c.l.b16 %v48
  %v140 = vunpack.c.h.b16 %v48
  %v141 = vunpack.c.l.b16 %v49
  %v142 = vunpack.c.h.b16 %v49
  %v143 = vunpack.c.l.b16 %v50
  %v144 = vunpack.c.h.b16 %v50
  %v145 = vunpack.c.l.b16 %v51
  %v146 = vunpack.c.h.b16 %v51
  %v147 = vunpack.c.l.b16 %v52
  %v148 = vunpack.c.h.b16 %v52
  %v149 = vpack.c.b16 %v89, %v85
  %v150 = vpack.c.b16 %v90, %v86
  %v151 = vpack.c.b16 %v91, %v87
  %v152 = vpack.c.b16 %v92, %v88
  %v153 = vpack.c.b16 %v97, %v93
  %v154 = vpack.c.b16 %v98, %v94
  %v155 = vpack.c.b16 %v99, %v95
  %v156 = vpack.c.b16 %v100, %v96
  %v157 = vpack.c.b16 %v105, %v101
  %v158 = vpack.c.b16 %v106, %v102
  %v159 = vpack.c.b16 %v107, %v103
  %v160 = vpack.c.b16 %v108, %v104
  %v161 = vpack.c.b16 %v113, %v109
  %v162 = vpack.c.b16 %v114, %v110
  %v163 = vpack.c.b16 %v115, %v111
  %v164 = vpack.c.b16 %v116, %v112
  %v165 = vpack.c.b16 %v121, %v117
  %v166 = vpack.c.b16 %v122, %v118
  %v167 = vpack.c.b16 %v123, %v119
  %v168 = vpack.c.b16 %v124, %v120
  %v169 = vpack.c.b16 %v129, %v125
  %v170 = vpack.c.b16 %v130, %v126
  %v171 = vpack.c.b16 %v131, %v127
  %v172 = vpack.c.b16 %v132, %v128
  %v173 = vpack.c.b16 %v137, %v133
  %v174 = vpack.c.b16 %v138, %v134
  %v175 = vpack.c.b16 %v139, %v135
  %v176 = vpack.c.b16 %v140, %v136
  %v177 = vpack.c.b16 %v145, %v141
  %v178 = vpack.c.b16 %v146, %v142
  %v179 = vpack.c.b16 %v147, %v143
  %v180 = vpack.c.b16 %v148, %v144
  %213 = vmatprep.subr.bf16.mxu0 %v150
  %214 = vmatpush1.bf16.msra.mxu0 %v149
  %215 = vmatprep.subr.bf16.mxu0 %v154
  %216 = vmatpush1.bf16.msra.mxu0 %v153
  %217 = vmatprep.subr.bf16.mxu0 %v158
  %218 = vmatpush1.bf16.msra.mxu0 %v157
  %219 = vmatprep.subr.bf16.mxu0 %v162
  %220 = vmatpush1.bf16.msra.mxu0 %v161
  %221 = vmatprep.subr.bf16.mxu0 %v166
  %222 = vmatpush1.bf16.msra.mxu0 %v165
  %223 = vmatprep.subr.bf16.mxu0 %v170
  %224 = vmatpush1.bf16.msra.mxu0 %v169
  %225 = vmatprep.subr.bf16.mxu0 %v174
  %226 = vmatpush1.bf16.msra.mxu0 %v173
  %227 = vmatprep.subr.bf16.mxu0 %v178
  %228 = vmatpush1.bf16.msra.mxu0 %v177
  %229 = vmatprep.subr.bf16.mxu0 0
  %230 = vmatpush1.bf16.msra.mxu0 0
  %231 = vmatprep.subr.bf16.mxu0 0
  %232 = vmatpush1.bf16.msra.mxu0 0
  %233 = vmatprep.subr.bf16.mxu0 0
  %234 = vmatpush1.bf16.msra.mxu0 0
  %235 = vmatprep.subr.bf16.mxu0 0
  %236 = vmatpush1.bf16.msra.mxu0 0
  %237 = vmatprep.subr.bf16.mxu0 0
  %238 = vmatpush1.bf16.msra.mxu0 0
  %239 = vmatprep.subr.bf16.mxu0 0
  %240 = vmatpush1.bf16.msra.mxu0 0
  %241 = vmatprep.subr.bf16.mxu0 0
  %242 = vmatpush1.bf16.msra.mxu0 0
  %243 = vmatprep.subr.bf16.mxu0 0
  %244 = vmatpush1.bf16.msra.mxu0 0
  %245 = vmatprep.mubr.bf16.mxu0 0
  %246 = vmatmul.mubr.bf16.gmra.mrb[0].mxu0 %v18
  %v247 = vpop.f32.mrb[0].mxu0
  %v248 = vadd.f32 0.0, %v247
  %v249 = vpop.f32.mrb[0].mxu0
  %v250 = vadd.f32 0.0, %v249
  %v251 = vpop.f32.mrb[0].mxu0
  %v252 = vpop.f32.mrb[0].mxu0
  %253 = vdwg.mxu0
  %254 = vmatprep.subr.bf16.mxu0 %v152
  %255 = vmatpush1.bf16.msra.mxu0 %v151
  %256 = vmatprep.subr.bf16.mxu0 %v156
  %257 = vmatpush1.bf16.msra.mxu0 %v155
  %258 = vmatprep.subr.bf16.mxu0 %v160
  %259 = vmatpush1.bf16.msra.mxu0 %v159
  %260 = vmatprep.subr.bf16.mxu0 %v164
  %261 = vmatpush1.bf16.msra.mxu0 %v163
  %262 = vmatprep.subr.bf16.mxu0 %v168
  %263 = vmatpush1.bf16.msra.mxu0 %v167
  %264 = vmatprep.subr.bf16.mxu0 %v172
  %265 = vmatpush1.bf16.msra.mxu0 %v171
  %266 = vmatprep.subr.bf16.mxu0 %v176
  %267 = vmatpush1.bf16.msra.mxu0 %v175
  %268 = vmatprep.subr.bf16.mxu0 %v180
  %269 = vmatpush1.bf16.msra.mxu0 %v179
  %270 = vmatprep.subr.bf16.mxu0 0
  %271 = vmatpush1.bf16.msra.mxu0 0
  %272 = vmatprep.subr.bf16.mxu0 0
  %273 = vmatpush1.bf16.msra.mxu0 0
  %274 = vmatprep.subr.bf16.mxu0 0
  %275 = vmatpush1.bf16.msra.mxu0 0
  %276 = vmatprep.subr.bf16.mxu0 0
  %277 = vmatpush1.bf16.msra.mxu0 0
  %278 = vmatprep.subr.bf16.mxu0 0
  %279 = vmatpush1.bf16.msra.mxu0 0
  %280 = vmatprep.subr.bf16.mxu0 0
  %281 = vmatpush1.bf16.msra.mxu0 0
  %282 = vmatprep.subr.bf16.mxu0 0
  %283 = vmatpush1.bf16.msra.mxu0 0
  %284 = vmatprep.subr.bf16.mxu0 0
  %285 = vmatpush1.bf16.msra.mxu0 0
  %286 = vmatprep.mubr.bf16.mxu0 0
  %287 = vmatmul.mubr.bf16.gmra.mrb[0].mxu0 %v18
  %v288 = vpop.f32.mrb[0].mxu0
  %v289 = vadd.f32 0.0, %v288
  %v290 = vpop.f32.mrb[0].mxu0
  %v291 = vadd.f32 0.0, %v290
  %v292 = vpop.f32.mrb[0].mxu0
  %v293 = vpop.f32.mrb[0].mxu0
  %294 = vdwg.mxu0
  %v295 = vunpack.c.l.bf16 %v19
  %v296 = vunpack.c.h.bf16 %v19
  %v297 = vunpack.c.l.bf16 %v20
  %v298 = vunpack.c.h.bf16 %v20
  %v299 = vadd.f32 %v295, %v248
  %v300 = vadd.f32 %v296, %v250
  %v301 = vadd.f32 %v297, %v289
  %v302 = vadd.f32 %v298, %v291
  %v303 = vxor.u32 %v299, 2147483648
  %v304 = vxor.u32 %v300, 2147483648
  %v305 = vxor.u32 %v301, 2147483648
  %v306 = vmul.f32 %v303, 1.442695
  %v307 = vpow.pop %v306
  %v308 = vmul.f32 %v304, 1.442695
  %v309 = vpow.pop %v308
  %v310 = vmul.f32 %v305, 1.442695
  %v311 = vpow.pop %v310
  %v312 = vadd.f32 %v307, 1.0
  %v313 = vadd.f32 %v309, 1.0
  %v314 = vadd.f32 %v311, 1.0
  %v315 = vrcp.pop %v312
  %v316 = vmul.f32 1.0, %v315
  %v317 = vrcp.pop %v313
  %v318 = vmul.f32 1.0, %v317
  %v319 = vrcp.pop %v314
  %v320 = vmul.f32 1.0, %v319
  %v321 = vtanh.pop %v302
  %v322 = vld [vmem:[#allocation3] sm:$0xff]
  %v323 = vmul.f32 %v318, %v322
  %v324 = vmul.f32 %v316, %v321
  %v325 = vadd.f32 %v323, %v324
  %v326 = vtanh.pop %v325
  %v327 = vmul.f32 %v320, %v326
  %328 = vst [vmem:[#allocation3] sm:$0xff] %v325
  %v329 = vpack.c.bf16 %v327, %v327
  %330 = vst [vmem:[#allocation2] sm:$0xf] %v329
  %331 = vst [vmem:[%s2] sm:$0xf] %v329
  %v332 = vld [vmem:[#allocation2] sm:$0xf]
  %s333 = scalar_lea.vmem %s0, 16
  %v334 = vld [vmem:[%s333] sm:$0xff]
  %v335 = vld [vmem:[%s333 + $0x8] sm:$0xff]
  %v336 = vld [vmem:[%s1] sm:$0xff]
  %v337 = vld [vmem:[%s1 + $0x8] sm:$0xff]
  %v338 = vld [vmem:[%s1 + $0x10] sm:$0xff]
  %v339 = vld [vmem:[%s1 + $0x18] sm:$0xff]
  %v340 = vld [vmem:[%s1 + $0x20] sm:$0xff]
  %v341 = vld [vmem:[%s1 + $0x28] sm:$0xff]
  %v342 = vld [vmem:[%s1 + $0x30] sm:$0xff]
  %v343 = vld [vmem:[%s1 + $0x38] sm:$0xff]
  %v344 = vld [vmem:[%s1 + $0x40] sm:$0xff]
  %v345 = vld [vmem:[%s1 + $0x48] sm:$0xff]
  %v346 = vld [vmem:[%s1 + $0x50] sm:$0xff]
  %v347 = vld [vmem:[%s1 + $0x58] sm:$0xff]
  %v348 = vld [vmem:[%s1 + $0x60] sm:$0xff]
  %v349 = vld [vmem:[%s1 + $0x68] sm:$0xff]
  %v350 = vld [vmem:[%s1 + $0x70] sm:$0xff]
  %v351 = vld [vmem:[%s1 + $0x78] sm:$0xff]
  %v352 = vld [vmem:[%s1 + $0x80] sm:$0xff]
  %v353 = vld [vmem:[%s1 + $0x88] sm:$0xff]
  %v354 = vld [vmem:[%s1 + $0x90] sm:$0xff]
  %v355 = vld [vmem:[%s1 + $0x98] sm:$0xff]
  %v356 = vld [vmem:[%s1 + $0xa0] sm:$0xff]
  %v357 = vld [vmem:[%s1 + $0xa8] sm:$0xff]
  %v358 = vld [vmem:[%s1 + $0xb0] sm:$0xff]
  %v359 = vld [vmem:[%s1 + $0xb8] sm:$0xff]
  %v360 = vld [vmem:[%s1 + $0xc0] sm:$0xff]
  %v361 = vld [vmem:[%s1 + $0xc8] sm:$0xff]
  %v362 = vld [vmem:[%s1 + $0xd0] sm:$0xff]
  %v363 = vld [vmem:[%s1 + $0xd8] sm:$0xff]
  %v364 = vld [vmem:[%s1 + $0xe0] sm:$0xff]
  %v365 = vld [vmem:[%s1 + $0xe8] sm:$0xff]
  %v366 = vld [vmem:[%s1 + $0xf0] sm:$0xff]
  %v367 = vld [vmem:[%s1 + $0xf8] sm:$0xff]
  %v400 = vunpack.c.l.b16 %v336
  %v401 = vunpack.c.h.b16 %v336
  %v402 = vunpack.c.l.b16 %v337
  %v403 = vunpack.c.h.b16 %v337
  %v404 = vunpack.c.l.b16 %v338
  %v405 = vunpack.c.h.b16 %v338
  %v406 = vunpack.c.l.b16 %v339
  %v407 = vunpack.c.h.b16 %v339
  %v408 = vunpack.c.l.b16 %v340
  %v409 = vunpack.c.h.b16 %v340
  %v410 = vunpack.c.l.b16 %v341
  %v411 = vunpack.c.h.b16 %v341
  %v412 = vunpack.c.l.b16 %v342
  %v413 = vunpack.c.h.b16 %v342
  %v414 = vunpack.c.l.b16 %v343
  %v415 = vunpack.c.h.b16 %v343
  %v416 = vunpack.c.l.b16 %v344
  %v417 = vunpack.c.h.b16 %v344
  %v418 = vunpack.c.l.b16 %v345
  %v419 = vunpack.c.h.b16 %v345
  %v420 = vunpack.c.l.b16 %v346
  %v421 = vunpack.c.h.b16 %v346
  %v422 = vunpack.c.l.b16 %v347
  %v423 = vunpack.c.h.b16 %v347
  %v424 = vunpack.c.l.b16 %v348
  %v425 = vunpack.c.h.b16 %v348
  %v426 = vunpack.c.l.b16 %v349
  %v427 = vunpack.c.h.b16 %v349
  %v428 = vunpack.c.l.b16 %v350
  %v429 = vunpack.c.h.b16 %v350
  %v430 = vunpack.c.l.b16 %v351
  %v431 = vunpack.c.h.b16 %v351
  %v432 = vunpack.c.l.b16 %v352
  %v433 = vunpack.c.h.b16 %v352
  %v434 = vunpack.c.l.b16 %v353
  %v435 = vunpack.c.h.b16 %v353
  %v436 = vunpack.c.l.b16 %v354
  %v437 = vunpack.c.h.b16 %v354
  %v438 = vunpack.c.l.b16 %v355
  %v439 = vunpack.c.h.b16 %v355
  %v440 = vunpack.c.l.b16 %v356
  %v441 = vunpack.c.h.b16 %v356
  %v442 = vunpack.c.l.b16 %v357
  %v443 = vunpack.c.h.b16 %v357
  %v444 = vunpack.c.l.b16 %v358
  %v445 = vunpack.c.h.b16 %v358
  %v446 = vunpack.c.l.b16 %v359
  %v447 = vunpack.c.h.b16 %v359
  %v448 = vunpack.c.l.b16 %v360
  %v449 = vunpack.c.h.b16 %v360
  %v450 = vunpack.c.l.b16 %v361
  %v451 = vunpack.c.h.b16 %v361
  %v452 = vunpack.c.l.b16 %v362
  %v453 = vunpack.c.h.b16 %v362
  %v454 = vunpack.c.l.b16 %v363
  %v455 = vunpack.c.h.b16 %v363
  %v456 = vunpack.c.l.b16 %v364
  %v457 = vunpack.c.h.b16 %v364
  %v458 = vunpack.c.l.b16 %v365
  %v459 = vunpack.c.h.b16 %v365
  %v460 = vunpack.c.l.b16 %v366
  %v461 = vunpack.c.h.b16 %v366
  %v462 = vunpack.c.l.b16 %v367
  %v463 = vunpack.c.h.b16 %v367
  %v464 = vpack.c.b16 %v404, %v400
  %v465 = vpack.c.b16 %v405, %v401
  %v466 = vpack.c.b16 %v406, %v402
  %v467 = vpack.c.b16 %v407, %v403
  %v468 = vpack.c.b16 %v412, %v408
  %v469 = vpack.c.b16 %v413, %v409
  %v470 = vpack.c.b16 %v414, %v410
  %v471 = vpack.c.b16 %v415, %v411
  %v472 = vpack.c.b16 %v420, %v416
  %v473 = vpack.c.b16 %v421, %v417
  %v474 = vpack.c.b16 %v422, %v418
  %v475 = vpack.c.b16 %v423, %v419
  %v476 = vpack.c.b16 %v428, %v424
  %v477 = vpack.c.b16 %v429, %v425
  %v478 = vpack.c.b16 %v430, %v426
  %v479 = vpack.c.b16 %v431, %v427
  %v480 = vpack.c.b16 %v436, %v432
  %v481 = vpack.c.b16 %v437, %v433
  %v482 = vpack.c.b16 %v438, %v434
  %v483 = vpack.c.b16 %v439, %v435
  %v484 = vpack.c.b16 %v444, %v440
  %v485 = vpack.c.b16 %v445, %v441
  %v486 = vpack.c.b16 %v446, %v442
  %v487 = vpack.c.b16 %v447, %v443
  %v488 = vpack.c.b16 %v452, %v448
  %v489 = vpack.c.b16 %v453, %v449
  %v490 = vpack.c.b16 %v454, %v450
  %v491 = vpack.c.b16 %v455, %v451
  %v492 = vpack.c.b16 %v460, %v456
  %v493 = vpack.c.b16 %v461, %v457
  %v494 = vpack.c.b16 %v462, %v458
  %v495 = vpack.c.b16 %v463, %v459
  %528 = vmatprep.subr.bf16.mxu0 %v465
  %529 = vmatpush1.bf16.msra.mxu0 %v464
  %530 = vmatprep.subr.bf16.mxu0 %v469
  %531 = vmatpush1.bf16.msra.mxu0 %v468
  %532 = vmatprep.subr.bf16.mxu0 %v473
  %533 = vmatpush1.bf16.msra.mxu0 %v472
  %534 = vmatprep.subr.bf16.mxu0 %v477
  %535 = vmatpush1.bf16.msra.mxu0 %v476
  %536 = vmatprep.subr.bf16.mxu0 %v481
  %537 = vmatpush1.bf16.msra.mxu0 %v480
  %538 = vmatprep.subr.bf16.mxu0 %v485
  %539 = vmatpush1.bf16.msra.mxu0 %v484
  %540 = vmatprep.subr.bf16.mxu0 %v489
  %541 = vmatpush1.bf16.msra.mxu0 %v488
  %542 = vmatprep.subr.bf16.mxu0 %v493
  %543 = vmatpush1.bf16.msra.mxu0 %v492
  %544 = vmatprep.subr.bf16.mxu0 0
  %545 = vmatpush1.bf16.msra.mxu0 0
  %546 = vmatprep.subr.bf16.mxu0 0
  %547 = vmatpush1.bf16.msra.mxu0 0
  %548 = vmatprep.subr.bf16.mxu0 0
  %549 = vmatpush1.bf16.msra.mxu0 0
  %550 = vmatprep.subr.bf16.mxu0 0
  %551 = vmatpush1.bf16.msra.mxu0 0
  %552 = vmatprep.subr.bf16.mxu0 0
  %553 = vmatpush1.bf16.msra.mxu0 0
  %554 = vmatprep.subr.bf16.mxu0 0
  %555 = vmatpush1.bf16.msra.mxu0 0
  %556 = vmatprep.subr.bf16.mxu0 0
  %557 = vmatpush1.bf16.msra.mxu0 0
  %558 = vmatprep.subr.bf16.mxu0 0
  %559 = vmatpush1.bf16.msra.mxu0 0
  %560 = vmatprep.mubr.bf16.mxu0 0
  %561 = vmatmul.mubr.bf16.gmra.mrb[0].mxu0 %v332
  %v562 = vpop.f32.mrb[0].mxu0
  %v563 = vadd.f32 0.0, %v562
  %v564 = vpop.f32.mrb[0].mxu0
  %v565 = vadd.f32 0.0, %v564
  %v566 = vpop.f32.mrb[0].mxu0
  %v567 = vpop.f32.mrb[0].mxu0
  %568 = vdwg.mxu0
  %569 = vmatprep.subr.bf16.mxu0 %v467
  %570 = vmatpush1.bf16.msra.mxu0 %v466
  %571 = vmatprep.subr.bf16.mxu0 %v471
  %572 = vmatpush1.bf16.msra.mxu0 %v470
  %573 = vmatprep.subr.bf16.mxu0 %v475
  %574 = vmatpush1.bf16.msra.mxu0 %v474
  %575 = vmatprep.subr.bf16.mxu0 %v479
  %576 = vmatpush1.bf16.msra.mxu0 %v478
  %577 = vmatprep.subr.bf16.mxu0 %v483
  %578 = vmatpush1.bf16.msra.mxu0 %v482
  %579 = vmatprep.subr.bf16.mxu0 %v487
  %580 = vmatpush1.bf16.msra.mxu0 %v486
  %581 = vmatprep.subr.bf16.mxu0 %v491
  %582 = vmatpush1.bf16.msra.mxu0 %v490
  %583 = vmatprep.subr.bf16.mxu0 %v495
  %584 = vmatpush1.bf16.msra.mxu0 %v494
  %585 = vmatprep.subr.bf16.mxu0 0
  %586 = vmatpush1.bf16.msra.mxu0 0
  %587 = vmatprep.subr.bf16.mxu0 0
  %588 = vmatpush1.bf16.msra.mxu0 0
  %589 = vmatprep.subr.bf16.mxu0 0
  %590 = vmatpush1.bf16.msra.mxu0 0
  %591 = vmatprep.subr.bf16.mxu0 0
  %592 = vmatpush1.bf16.msra.mxu0 0
  %593 = vmatprep.subr.bf16.mxu0 0
  %594 = vmatpush1.bf16.msra.mxu0 0
  %595 = vmatprep.subr.bf16.mxu0 0
  %596 = vmatpush1.bf16.msra.mxu0 0
  %597 = vmatprep.subr.bf16.mxu0 0
  %598 = vmatpush1.bf16.msra.mxu0 0
  %599 = vmatprep.subr.bf16.mxu0 0
  %600 = vmatpush1.bf16.msra.mxu0 0
  %601 = vmatprep.mubr.bf16.mxu0 0
  %602 = vmatmul.mubr.bf16.gmra.mrb[0].mxu0 %v332
  %v603 = vpop.f32.mrb[0].mxu0
  %v604 = vadd.f32 0.0, %v603
  %v605 = vpop.f32.mrb[0].mxu0
  %v606 = vadd.f32 0.0, %v605
  %v607 = vpop.f32.mrb[0].mxu0
  %v608 = vpop.f32.mrb[0].mxu0
  %609 = vdwg.mxu0
  %v610 = vunpack.c.l.bf16 %v334
  %v611 = vunpack.c.h.bf16 %v334
  %v612 = vunpack.c.l.bf16 %v335
  %v613 = vunpack.c.h.bf16 %v335
  %v614 = vadd.f32 %v610, %v563
  %v615 = vadd.f32 %v611, %v565
  %v616 = vadd.f32 %v612, %v604
  %v617 = vadd.f32 %v613, %v606
  %v618 = vxor.u32 %v614, 2147483648
  %v619 = vxor.u32 %v615, 2147483648
  %v620 = vxor.u32 %v616, 2147483648
  %v621 = vmul.f32 %v618, 1.442695
  %v622 = vpow.pop %v621
  %v623 = vmul.f32 %v619, 1.442695
  %v624 = vpow.pop %v623
  %v625 = vmul.f32 %v620, 1.442695
  %v626 = vpow.pop %v625
  %v627 = vadd.f32 %v622, 1.0
  %v628 = vadd.f32 %v624, 1.0
  %v629 = vadd.f32 %v626, 1.0
  %v630 = vrcp.pop %v627
  %v631 = vmul.f32 1.0, %v630
  %v632 = vrcp.pop %v628
  %v633 = vmul.f32 1.0, %v632
  %v634 = vrcp.pop %v629
  %v635 = vmul.f32 1.0, %v634
  %v636 = vtanh.pop %v617
  %v637 = vld [vmem:[#allocation3] sm:$0xff]
  %v638 = vmul.f32 %v633, %v637
  %v639 = vmul.f32 %v631, %v636
  %v640 = vadd.f32 %v638, %v639
  %v641 = vtanh.pop %v640
  %v642 = vmul.f32 %v635, %v641
  %643 = vst [vmem:[#allocation3] sm:$0xff] %v640
  %v644 = vpack.c.bf16 %v642, %v642
  %645 = vst [vmem:[#allocation2] sm:$0xf] %v644
  %s646 = scalar_lea.vmem %s2, 4
  %647 = vst [vmem:[%s646] sm:$0xf] %v644
  %v648 = vld [vmem:[#allocation2] sm:$0xf]
  %s649 = scalar_lea.vmem %s0, 32
  %v650 = vld [vmem:[%s649] sm:$0xff]
  %v651 = vld [vmem:[%s649 + $0x8] sm:$0xff]
  %v652 = vld [vmem:[%s1] sm:$0xff]
  %v653 = vld [vmem:[%s1 + $0x8] sm:$0xff]
  %v654 = vld [vmem:[%s1 + $0x10] sm:$0xff]
  %v655 = vld [vmem:[%s1 + $0x18] sm:$0xff]
  %v656 = vld [vmem:[%s1 + $0x20] sm:$0xff]
  %v657 = vld [vmem:[%s1 + $0x28] sm:$0xff]
  %v658 = vld [vmem:[%s1 + $0x30] sm:$0xff]
  %v659 = vld [vmem:[%s1 + $0x38] sm:$0xff]
  %v660 = vld [vmem:[%s1 + $0x40] sm:$0xff]
  %v661 = vld [vmem:[%s1 + $0x48] sm:$0xff]
  %v662 = vld [vmem:[%s1 + $0x50] sm:$0xff]
  %v663 = vld [vmem:[%s1 + $0x58] sm:$0xff]
  %v664 = vld [vmem:[%s1 + $0x60] sm:$0xff]
  %v665 = vld [vmem:[%s1 + $0x68] sm:$0xff]
  %v666 = vld [vmem:[%s1 + $0x70] sm:$0xff]
  %v667 = vld [vmem:[%s1 + $0x78] sm:$0xff]
  %v668 = vld [vmem:[%s1 + $0x80] sm:$0xff]
  %v669 = vld [vmem:[%s1 + $0x88] sm:$0xff]
  %v670 = vld [vmem:[%s1 + $0x90] sm:$0xff]
  %v671 = vld [vmem:[%s1 + $0x98] sm:$0xff]
  %v672 = vld [vmem:[%s1 + $0xa0] sm:$0xff]
  %v673 = vld [vmem:[%s1 + $0xa8] sm:$0xff]
  %v674 = vld [vmem:[%s1 + $0xb0] sm:$0xff]
  %v675 = vld [vmem:[%s1 + $0xb8] sm:$0xff]
  %v676 = vld [vmem:[%s1 + $0xc0] sm:$0xff]
  %v677 = vld [vmem:[%s1 + $0xc8] sm:$0xff]
  %v678 = vld [vmem:[%s1 + $0xd0] sm:$0xff]
  %v679 = vld [vmem:[%s1 + $0xd8] sm:$0xff]
  %v680 = vld [vmem:[%s1 + $0xe0] sm:$0xff]
  %v681 = vld [vmem:[%s1 + $0xe8] sm:$0xff]
  %v682 = vld [vmem:[%s1 + $0xf0] sm:$0xff]
  %v683 = vld [vmem:[%s1 + $0xf8] sm:$0xff]
  %v716 = vunpack.c.l.b16 %v652
  %v717 = vunpack.c.h.b16 %v652
  %v718 = vunpack.c.l.b16 %v653
  %v719 = vunpack.c.h.b16 %v653
  %v720 = vunpack.c.l.b16 %v654
  %v721 = vunpack.c.h.b16 %v654
  %v722 = vunpack.c.l.b16 %v655
  %v723 = vunpack.c.h.b16 %v655
  %v724 = vunpack.c.l.b16 %v656
  %v725 = vunpack.c.h.b16 %v656
  %v726 = vunpack.c.l.b16 %v657
  %v727 = vunpack.c.h.b16 %v657
  %v728 = vunpack.c.l.b16 %v658
  %v729 = vunpack.c.h.b16 %v658
  %v730 = vunpack.c.l.b16 %v659
  %v731 = vunpack.c.h.b16 %v659
  %v732 = vunpack.c.l.b16 %v660
  %v733 = vunpack.c.h.b16 %v660
  %v734 = vunpack.c.l.b16 %v661
  %v735 = vunpack.c.h.b16 %v661
  %v736 = vunpack.c.l.b16 %v662
  %v737 = vunpack.c.h.b16 %v662
  %v738 = vunpack.c.l.b16 %v663
  %v739 = vunpack.c.h.b16 %v663
  %v740 = vunpack.c.l.b16 %v664
  %v741 = vunpack.c.h.b16 %v664
  %v742 = vunpack.c.l.b16 %v665
  %v743 = vunpack.c.h.b16 %v665
  %v744 = vunpack.c.l.b16 %v666
  %v745 = vunpack.c.h.b16 %v666
  %v746 = vunpack.c.l.b16 %v667
  %v747 = vunpack.c.h.b16 %v667
  %v748 = vunpack.c.l.b16 %v668
  %v749 = vunpack.c.h.b16 %v668
  %v750 = vunpack.c.l.b16 %v669
  %v751 = vunpack.c.h.b16 %v669
  %v752 = vunpack.c.l.b16 %v670
  %v753 = vunpack.c.h.b16 %v670
  %v754 = vunpack.c.l.b16 %v671
  %v755 = vunpack.c.h.b16 %v671
  %v756 = vunpack.c.l.b16 %v672
  %v757 = vunpack.c.h.b16 %v672
  %v758 = vunpack.c.l.b16 %v673
  %v759 = vunpack.c.h.b16 %v673
  %v760 = vunpack.c.l.b16 %v674
  %v761 = vunpack.c.h.b16 %v674
  %v762 = vunpack.c.l.b16 %v675
  %v763 = vunpack.c.h.b16 %v675
  %v764 = vunpack.c.l.b16 %v676
  %v765 = vunpack.c.h.b16 %v676
  %v766 = vunpack.c.l.b16 %v677
  %v767 = vunpack.c.h.b16 %v677
  %v768 = vunpack.c.l.b16 %v678
  %v769 = vunpack.c.h.b16 %v678
  %v770 = vunpack.c.l.b16 %v679
  %v771 = vunpack.c.h.b16 %v679
  %v772 = vunpack.c.l.b16 %v680
  %v773 = vunpack.c.h.b16 %v680
  %v774 = vunpack.c.l.b16 %v681
  %v775 = vunpack.c.h.b16 %v681
  %v776 = vunpack.c.l.b16 %v682
  %v777 = vunpack.c.h.b16 %v682
  %v778 = vunpack.c.l.b16 %v683
  %v779 = vunpack.c.h.b16 %v683
  %v780 = vpack.c.b16 %v720, %v716
  %v781 = vpack.c.b16 %v721, %v717
  %v782 = vpack.c.b16 %v722, %v718
  %v783 = vpack.c.b16 %v723, %v719
  %v784 = vpack.c.b16 %v728, %v724
  %v785 = vpack.c.b16 %v729, %v725
  %v786 = vpack.c.b16 %v730, %v726
  %v787 = vpack.c.b16 %v731, %v727
  %v788 = vpack.c.b16 %v736, %v732
  %v789 = vpack.c.b16 %v737, %v733
  %v790 = vpack.c.b16 %v738, %v734
  %v791 = vpack.c.b16 %v739, %v735
  %v792 = vpack.c.b16 %v744, %v740
  %v793 = vpack.c.b16 %v745, %v741
  %v794 = vpack.c.b16 %v746, %v742
  %v795 = vpack.c.b16 %v747, %v743
  %v796 = vpack.c.b16 %v752, %v748
  %v797 = vpack.c.b16 %v753, %v749
  %v798 = vpack.c.b16 %v754, %v750
  %v799 = vpack.c.b16 %v755, %v751
  %v800 = vpack.c.b16 %v760, %v756
  %v801 = vpack.c.b16 %v761, %v757
  %v802 = vpack.c.b16 %v762, %v758
  %v803 = vpack.c.b16 %v763, %v759
  %v804 = vpack.c.b16 %v768, %v764
  %v805 = vpack.c.b16 %v769, %v765
  %v806 = vpack.c.b16 %v770, %v766
  %v807 = vpack.c.b16 %v771, %v767
  %v808 = vpack.c.b16 %v776, %v772
  %v809 = vpack.c.b16 %v777, %v773
  %v810 = vpack.c.b16 %v778, %v774
  %v811 = vpack.c.b16 %v779, %v775
  %844 = vmatprep.subr.bf16.mxu0 %v781
  %845 = vmatpush1.bf16.msra.mxu0 %v780
  %846 = vmatprep.subr.bf16.mxu0 %v785
  %847 = vmatpush1.bf16.msra.mxu0 %v784
  %848 = vmatprep.subr.bf16.mxu0 %v789
  %849 = vmatpush1.bf16.msra.mxu0 %v788
  %850 = vmatprep.subr.bf16.mxu0 %v793
  %851 = vmatpush1.bf16.msra.mxu0 %v792
  %852 = vmatprep.subr.bf16.mxu0 %v797
  %853 = vmatpush1.bf16.msra.mxu0 %v796
  %854 = vmatprep.subr.bf16.mxu0 %v801
  %855 = vmatpush1.bf16.msra.mxu0 %v800
  %856 = vmatprep.subr.bf16.mxu0 %v805
  %857 = vmatpush1.bf16.msra.mxu0 %v804
  %858 = vmatprep.subr.bf16.mxu0 %v809
  %859 = vmatpush1.bf16.msra.mxu0 %v808
  %860 = vmatprep.subr.bf16.mxu0 0
  %861 = vmatpush1.bf16.msra.mxu0 0
  %862 = vmatprep.subr.bf16.mxu0 0
  %863 = vmatpush1.bf16.msra.mxu0 0
  %864 = vmatprep.subr.bf16.mxu0 0
  %865 = vmatpush1.bf16.msra.mxu0 0
  %866 = vmatprep.subr.bf16.mxu0 0
  %867 = vmatpush1.bf16.msra.mxu0 0
  %868 = vmatprep.subr.bf16.mxu0 0
  %869 = vmatpush1.bf16.msra.mxu0 0
  %870 = vmatprep.subr.bf16.mxu0 0
  %871 = vmatpush1.bf16.msra.mxu0 0
  %872 = vmatprep.subr.bf16.mxu0 0
  %873 = vmatpush1.bf16.msra.mxu0 0
  %874 = vmatprep.subr.bf16.mxu0 0
  %875 = vmatpush1.bf16.msra.mxu0 0
  %876 = vmatprep.mubr.bf16.mxu0 0
  %877 = vmatmul.mubr.bf16.gmra.mrb[0].mxu0 %v648
  %v878 = vpop.f32.mrb[0].mxu0
  %v879 = vadd.f32 0.0, %v878
  %v880 = vpop.f32.mrb[0].mxu0
  %v881 = vadd.f32 0.0, %v880
  %v882 = vpop.f32.mrb[0].mxu0
  %v883 = vpop.f32.mrb[0].mxu0
  %884 = vdwg.mxu0
  %885 = vmatprep.subr.bf16.mxu0 %v783
  %886 = vmatpush1.bf16.msra.mxu0 %v782
  %887 = vmatprep.subr.bf16.mxu0 %v787
  %888 = vmatpush1.bf16.msra.mxu0 %v786
  %889 = vmatprep.subr.bf16.mxu0 %v791
  %890 = vmatpush1.bf16.msra.mxu0 %v790
  %891 = vmatprep.subr.bf16.mxu0 %v795
  %892 = vmatpush1.bf16.msra.mxu0 %v794
  %893 = vmatprep.subr.bf16.mxu0 %v799
  %894 = vmatpush1.bf16.msra.mxu0 %v798
  %895 = vmatprep.subr.bf16.mxu0 %v803
  %896 = vmatpush1.bf16.msra.mxu0 %v802
  %897 = vmatprep.subr.bf16.mxu0 %v807
  %898 = vmatpush1.bf16.msra.mxu0 %v806
  %899 = vmatprep.subr.bf16.mxu0 %v811
  %900 = vmatpush1.bf16.msra.mxu0 %v810
  %901 = vmatprep.subr.bf16.mxu0 0
  %902 = vmatpush1.bf16.msra.mxu0 0
  %903 = vmatprep.subr.bf16.mxu0 0
  %904 = vmatpush1.bf16.msra.mxu0 0
  %905 = vmatprep.subr.bf16.mxu0 0
  %906 = vmatpush1.bf16.msra.mxu0 0
  %907 = vmatprep.subr.bf16.mxu0 0
  %908 = vmatpush1.bf16.msra.mxu0 0
  %909 = vmatprep.subr.bf16.mxu0 0
  %910 = vmatpush1.bf16.msra.mxu0 0
  %911 = vmatprep.subr.bf16.mxu0 0
  %912 = vmatpush1.bf16.msra.mxu0 0
  %913 = vmatprep.subr.bf16.mxu0 0
  %914 = vmatpush1.bf16.msra.mxu0 0
  %915 = vmatprep.subr.bf16.mxu0 0
  %916 = vmatpush1.bf16.msra.mxu0 0
  %917 = vmatprep.mubr.bf16.mxu0 0
  %918 = vmatmul.mubr.bf16.gmra.mrb[0].mxu0 %v648
  %v919 = vpop.f32.mrb[0].mxu0
  %v920 = vadd.f32 0.0, %v919
  %v921 = vpop.f32.mrb[0].mxu0
  %v922 = vadd.f32 0.0, %v921
  %v923 = vpop.f32.mrb[0].mxu0
  %v924 = vpop.f32.mrb[0].mxu0
  %925 = vdwg.mxu0
  %v926 = vunpack.c.l.bf16 %v650
  %v927 = vunpack.c.h.bf16 %v650
  %v928 = vunpack.c.l.bf16 %v651
  %v929 = vunpack.c.h.bf16 %v651
  %v930 = vadd.f32 %v926, %v879
  %v931 = vadd.f32 %v927, %v881
  %v932 = vadd.f32 %v928, %v920
  %v933 = vadd.f32 %v929, %v922
  %v934 = vxor.u32 %v930, 2147483648
  %v935 = vxor.u32 %v931, 2147483648
  %v936 = vxor.u32 %v932, 2147483648
  %v937 = vmul.f32 %v934, 1.442695
  %v938 = vpow.pop %v937
  %v939 = vmul.f32 %v935, 1.442695
  %v940 = vpow.pop %v939
  %v941 = vmul.f32 %v936, 1.442695
  %v942 = vpow.pop %v941
  %v943 = vadd.f32 %v938, 1.0
  %v944 = vadd.f32 %v940, 1.0
  %v945 = vadd.f32 %v942, 1.0
  %v946 = vrcp.pop %v943
  %v947 = vmul.f32 1.0, %v946
  %v948 = vrcp.pop %v944
  %v949 = vmul.f32 1.0, %v948
  %v950 = vrcp.pop %v945
  %v951 = vmul.f32 1.0, %v950
  %v952 = vtanh.pop %v933
  %v953 = vld [vmem:[#allocation3] sm:$0xff]
  %v954 = vmul.f32 %v949, %v953
  %v955 = vmul.f32 %v947, %v952
  %v956 = vadd.f32 %v954, %v955
  %v957 = vtanh.pop %v956
  %v958 = vmul.f32 %v951, %v957
  %959 = vst [vmem:[#allocation3] sm:$0xff] %v956
  %v960 = vpack.c.bf16 %v958, %v958
  %961 = vst [vmem:[#allocation2] sm:$0xf] %v960
  %s962 = scalar_lea.vmem %s2, 8
  %963 = vst [vmem:[%s962] sm:$0xf] %v960
  %v964 = vld [vmem:[#allocation2] sm:$0xf]
  %s965 = scalar_lea.vmem %s0, 48
  %v966 = vld [vmem:[%s965] sm:$0xff]
  %v967 = vld [vmem:[%s965 + $0x8] sm:$0xff]
  %v968 = vld [vmem:[%s1] sm:$0xff]
  %v969 = vld [vmem:[%s1 + $0x8] sm:$0xff]
  %v970 = vld [vmem:[%s1 + $0x10] sm:$0xff]
  %v971 = vld [vmem:[%s1 + $0x18] sm:$0xff]
  %v972 = vld [vmem:[%s1 + $0x20] sm:$0xff]
  %v973 = vld [vmem:[%s1 + $0x28] sm:$0xff]
  %v974 = vld [vmem:[%s1 + $0x30] sm:$0xff]
  %v975 = vld [vmem:[%s1 + $0x38] sm:$0xff]
  %v976 = vld [vmem:[%s1 + $0x40] sm:$0xff]
  %v977 = vld [vmem:[%s1 + $0x48] sm:$0xff]
  %v978 = vld [vmem:[%s1 + $0x50] sm:$0xff]
  %v979 = vld [vmem:[%s1 + $0x58] sm:$0xff]
  %v980 = vld [vmem:[%s1 + $0x60] sm:$0xff]
  %v981 = vld [vmem:[%s1 + $0x68] sm:$0xff]
  %v982 = vld [vmem:[%s1 + $0x70] sm:$0xff]
  %v983 = vld [vmem:[%s1 + $0x78] sm:$0xff]
  %v984 = vld [vmem:[%s1 + $0x80] sm:$0xff]
  %v985 = vld [vmem:[%s1 + $0x88] sm:$0xff]
  %v986 = vld [vmem:[%s1 + $0x90] sm:$0xff]
  %v987 = vld [vmem:[%s1 + $0x98] sm:$0xff]
  %v988 = vld [vmem:[%s1 + $0xa0] sm:$0xff]
  %v989 = vld [vmem:[%s1 + $0xa8] sm:$0xff]
  %v990 = vld [vmem:[%s1 + $0xb0] sm:$0xff]
  %v991 = vld [vmem:[%s1 + $0xb8] sm:$0xff]
  %v992 = vld [vmem:[%s1 + $0xc0] sm:$0xff]
  %v993 = vld [vmem:[%s1 + $0xc8] sm:$0xff]
  %v994 = vld [vmem:[%s1 + $0xd0] sm:$0xff]
  %v995 = vld [vmem:[%s1 + $0xd8] sm:$0xff]
  %v996 = vld [vmem:[%s1 + $0xe0] sm:$0xff]
  %v997 = vld [vmem:[%s1 + $0xe8] sm:$0xff]
  %v998 = vld [vmem:[%s1 + $0xf0] sm:$0xff]
  %v999 = vld [vmem:[%s1 + $0xf8] sm:$0xff]
  %v1032 = vunpack.c.l.b16 %v968
  %v1033 = vunpack.c.h.b16 %v968
  %v1034 = vunpack.c.l.b16 %v969
  %v1035 = vunpack.c.h.b16 %v969
  %v1036 = vunpack.c.l.b16 %v970
  %v1037 = vunpack.c.h.b16 %v970
  %v1038 = vunpack.c.l.b16 %v971
  %v1039 = vunpack.c.h.b16 %v971
  %v1040 = vunpack.c.l.b16 %v972
  %v1041 = vunpack.c.h.b16 %v972
  %v1042 = vunpack.c.l.b16 %v973
  %v1043 = vunpack.c.h.b16 %v973
  %v1044 = vunpack.c.l.b16 %v974
  %v1045 = vunpack.c.h.b16 %v974
  %v1046 = vunpack.c.l.b16 %v975
  %v1047 = vunpack.c.h.b16 %v975
  %v1048 = vunpack.c.l.b16 %v976
  %v1049 = vunpack.c.h.b16 %v976
  %v1050 = vunpack.c.l.b16 %v977
  %v1051 = vunpack.c.h.b16 %v977
  %v1052 = vunpack.c.l.b16 %v978
  %v1053 = vunpack.c.h.b16 %v978
  %v1054 = vunpack.c.l.b16 %v979
  %v1055 = vunpack.c.h.b16 %v979
  %v1056 = vunpack.c.l.b16 %v980
  %v1057 = vunpack.c.h.b16 %v980
  %v1058 = vunpack.c.l.b16 %v981
  %v1059 = vunpack.c.h.b16 %v981
  %v1060 = vunpack.c.l.b16 %v982
  %v1061 = vunpack.c.h.b16 %v982
  %v1062 = vunpack.c.l.b16 %v983
  %v1063 = vunpack.c.h.b16 %v983
  %v1064 = vunpack.c.l.b16 %v984
  %v1065 = vunpack.c.h.b16 %v984
  %v1066 = vunpack.c.l.b16 %v985
  %v1067 = vunpack.c.h.b16 %v985
  %v1068 = vunpack.c.l.b16 %v986
  %v1069 = vunpack.c.h.b16 %v986
  %v1070 = vunpack.c.l.b16 %v987
  %v1071 = vunpack.c.h.b16 %v987
  %v1072 = vunpack.c.l.b16 %v988
  %v1073 = vunpack.c.h.b16 %v988
  %v1074 = vunpack.c.l.b16 %v989
  %v1075 = vunpack.c.h.b16 %v989
  %v1076 = vunpack.c.l.b16 %v990
  %v1077 = vunpack.c.h.b16 %v990
  %v1078 = vunpack.c.l.b16 %v991
  %v1079 = vunpack.c.h.b16 %v991
  %v1080 = vunpack.c.l.b16 %v992
  %v1081 = vunpack.c.h.b16 %v992
  %v1082 = vunpack.c.l.b16 %v993
  %v1083 = vunpack.c.h.b16 %v993
  %v1084 = vunpack.c.l.b16 %v994
  %v1085 = vunpack.c.h.b16 %v994
  %v1086 = vunpack.c.l.b16 %v995
  %v1087 = vunpack.c.h.b16 %v995
  %v1088 = vunpack.c.l.b16 %v996
  %v1089 = vunpack.c.h.b16 %v996
  %v1090 = vunpack.c.l.b16 %v997
  %v1091 = vunpack.c.h.b16 %v997
  %v1092 = vunpack.c.l.b16 %v998
  %v1093 = vunpack.c.h.b16 %v998
  %v1094 = vunpack.c.l.b16 %v999
  %v1095 = vunpack.c.h.b16 %v999
  %v1096 = vpack.c.b16 %v1036, %v1032
  %v1097 = vpack.c.b16 %v1037, %v1033
  %v1098 = vpack.c.b16 %v1038, %v1034
  %v1099 = vpack.c.b16 %v1039, %v1035
  %v1100 = vpack.c.b16 %v1044, %v1040
  %v1101 = vpack.c.b16 %v1045, %v1041
  %v1102 = vpack.c.b16 %v1046, %v1042
  %v1103 = vpack.c.b16 %v1047, %v1043
  %v1104 = vpack.c.b16 %v1052, %v1048
  %v1105 = vpack.c.b16 %v1053, %v1049
  %v1106 = vpack.c.b16 %v1054, %v1050
  %v1107 = vpack.c.b16 %v1055, %v1051
  %v1108 = vpack.c.b16 %v1060, %v1056
  %v1109 = vpack.c.b16 %v1061, %v1057
  %v1110 = vpack.c.b16 %v1062, %v1058
  %v1111 = vpack.c.b16 %v1063, %v1059
  %v1112 = vpack.c.b16 %v1068, %v1064
  %v1113 = vpack.c.b16 %v1069, %v1065
  %v1114 = vpack.c.b16 %v1070, %v1066
  %v1115 = vpack.c.b16 %v1071, %v1067
  %v1116 = vpack.c.b16 %v1076, %v1072
  %v1117 = vpack.c.b16 %v1077, %v1073
  %v1118 = vpack.c.b16 %v1078, %v1074
  %v1119 = vpack.c.b16 %v1079, %v1075
  %v1120 = vpack.c.b16 %v1084, %v1080
  %v1121 = vpack.c.b16 %v1085, %v1081
  %v1122 = vpack.c.b16 %v1086, %v1082
  %v1123 = vpack.c.b16 %v1087, %v1083
  %v1124 = vpack.c.b16 %v1092, %v1088
  %v1125 = vpack.c.b16 %v1093, %v1089
  %v1126 = vpack.c.b16 %v1094, %v1090
  %v1127 = vpack.c.b16 %v1095, %v1091
  %1160 = vmatprep.subr.bf16.mxu0 %v1097
  %1161 = vmatpush1.bf16.msra.mxu0 %v1096
  %1162 = vmatprep.subr.bf16.mxu0 %v1101
  %1163 = vmatpush1.bf16.msra.mxu0 %v1100
  %1164 = vmatprep.subr.bf16.mxu0 %v1105
  %1165 = vmatpush1.bf16.msra.mxu0 %v1104
  %1166 = vmatprep.subr.bf16.mxu0 %v1109
  %1167 = vmatpush1.bf16.msra.mxu0 %v1108
  %1168 = vmatprep.subr.bf16.mxu0 %v1113
  %1169 = vmatpush1.bf16.msra.mxu0 %v1112
  %1170 = vmatprep.subr.bf16.mxu0 %v1117
  %1171 = vmatpush1.bf16.msra.mxu0 %v1116
  %1172 = vmatprep.subr.bf16.mxu0 %v1121
  %1173 = vmatpush1.bf16.msra.mxu0 %v1120
  %1174 = vmatprep.subr.bf16.mxu0 %v1125
  %1175 = vmatpush1.bf16.msra.mxu0 %v1124
  %1176 = vmatprep.subr.bf16.mxu0 0
  %1177 = vmatpush1.bf16.msra.mxu0 0
  %1178 = vmatprep.subr.bf16.mxu0 0
  %1179 = vmatpush1.bf16.msra.mxu0 0
  %1180 = vmatprep.subr.bf16.mxu0 0
  %1181 = vmatpush1.bf16.msra.mxu0 0
  %1182 = vmatprep.subr.bf16.mxu0 0
  %1183 = vmatpush1.bf16.msra.mxu0 0
  %1184 = vmatprep.subr.bf16.mxu0 0
  %1185 = vmatpush1.bf16.msra.mxu0 0
  %1186 = vmatprep.subr.bf16.mxu0 0
  %1187 = vmatpush1.bf16.msra.mxu0 0
  %1188 = vmatprep.subr.bf16.mxu0 0
  %1189 = vmatpush1.bf16.msra.mxu0 0
  %1190 = vmatprep.subr.bf16.mxu0 0
  %1191 = vmatpush1.bf16.msra.mxu0 0
  %1192 = vmatprep.mubr.bf16.mxu0 0
  %1193 = vmatmul.mubr.bf16.gmra.mrb[0].mxu0 %v964
  %v1194 = vpop.f32.mrb[0].mxu0
  %v1195 = vadd.f32 0.0, %v1194
  %v1196 = vpop.f32.mrb[0].mxu0
  %v1197 = vadd.f32 0.0, %v1196
  %v1198 = vpop.f32.mrb[0].mxu0
  %v1199 = vpop.f32.mrb[0].mxu0
  %1200 = vdwg.mxu0
  %1201 = vmatprep.subr.bf16.mxu0 %v1099
  %1202 = vmatpush1.bf16.msra.mxu0 %v1098
  %1203 = vmatprep.subr.bf16.mxu0 %v1103
  %1204 = vmatpush1.bf16.msra.mxu0 %v1102
  %1205 = vmatprep.subr.bf16.mxu0 %v1107
  %1206 = vmatpush1.bf16.msra.mxu0 %v1106
  %1207 = vmatprep.subr.bf16.mxu0 %v1111
  %1208 = vmatpush1.bf16.msra.mxu0 %v1110
  %1209 = vmatprep.subr.bf16.mxu0 %v1115
  %1210 = vmatpush1.bf16.msra.mxu0 %v1114
  %1211 = vmatprep.subr.bf16.mxu0 %v1119
  %1212 = vmatpush1.bf16.msra.mxu0 %v1118
  %1213 = vmatprep.subr.bf16.mxu0 %v1123
  %1214 = vmatpush1.bf16.msra.mxu0 %v1122
  %1215 = vmatprep.subr.bf16.mxu0 %v1127
  %1216 = vmatpush1.bf16.msra.mxu0 %v1126
  %1217 = vmatprep.subr.bf16.mxu0 0
  %1218 = vmatpush1.bf16.msra.mxu0 0
  %1219 = vmatprep.subr.bf16.mxu0 0
  %1220 = vmatpush1.bf16.msra.mxu0 0
  %1221 = vmatprep.subr.bf16.mxu0 0
  %1222 = vmatpush1.bf16.msra.mxu0 0
  %1223 = vmatprep.subr.bf16.mxu0 0
  %1224 = vmatpush1.bf16.msra.mxu0 0
  %1225 = vmatprep.subr.bf16.mxu0 0
  %1226 = vmatpush1.bf16.msra.mxu0 0
  %1227 = vmatprep.subr.bf16.mxu0 0
  %1228 = vmatpush1.bf16.msra.mxu0 0
  %1229 = vmatprep.subr.bf16.mxu0 0
  %1230 = vmatpush1.bf16.msra.mxu0 0
  %1231 = vmatprep.subr.bf16.mxu0 0
  %1232 = vmatpush1.bf16.msra.mxu0 0
  %1233 = vmatprep.mubr.bf16.mxu0 0
  %1234 = vmatmul.mubr.bf16.gmra.mrb[0].mxu0 %v964
  %v1235 = vpop.f32.mrb[0].mxu0
  %v1236 = vadd.f32 0.0, %v1235
  %v1237 = vpop.f32.mrb[0].mxu0
  %v1238 = vadd.f32 0.0, %v1237
  %v1239 = vpop.f32.mrb[0].mxu0
  %v1240 = vpop.f32.mrb[0].mxu0
  %1241 = vdwg.mxu0
  %v1242 = vunpack.c.l.bf16 %v966
  %v1243 = vunpack.c.h.bf16 %v966
  %v1244 = vunpack.c.l.bf16 %v967
  %v1245 = vunpack.c.h.bf16 %v967
  %v1246 = vadd.f32 %v1242, %v1195
  %v1247 = vadd.f32 %v1243, %v1197
  %v1248 = vadd.f32 %v1244, %v1236
  %v1249 = vadd.f32 %v1245, %v1238
  %v1250 = vxor.u32 %v1246, 2147483648
  %v1251 = vxor.u32 %v1247, 2147483648
  %v1252 = vxor.u32 %v1248, 2147483648
  %v1253 = vmul.f32 %v1250, 1.442695
  %v1254 = vpow.pop %v1253
  %v1255 = vmul.f32 %v1251, 1.442695
  %v1256 = vpow.pop %v1255
  %v1257 = vmul.f32 %v1252, 1.442695
  %v1258 = vpow.pop %v1257
  %v1259 = vadd.f32 %v1254, 1.0
  %v1260 = vadd.f32 %v1256, 1.0
  %v1261 = vadd.f32 %v1258, 1.0
  %v1262 = vrcp.pop %v1259
  %v1263 = vmul.f32 1.0, %v1262
  %v1264 = vrcp.pop %v1260
  %v1265 = vmul.f32 1.0, %v1264
  %v1266 = vrcp.pop %v1261
  %v1267 = vmul.f32 1.0, %v1266
  %v1268 = vtanh.pop %v1249
  %v1269 = vld [vmem:[#allocation3] sm:$0xff]
  %v1270 = vmul.f32 %v1265, %v1269
  %v1271 = vmul.f32 %v1263, %v1268
  %v1272 = vadd.f32 %v1270, %v1271
  %v1273 = vtanh.pop %v1272
  %v1274 = vmul.f32 %v1267, %v1273
  %1275 = vst [vmem:[#allocation3] sm:$0xff] %v1272
  %v1276 = vpack.c.bf16 %v1274, %v1274
  %1277 = vst [vmem:[#allocation2] sm:$0xf] %v1276
  %s1278 = scalar_lea.vmem %s2, 12
  %1279 = vst [vmem:[%s1278] sm:$0xf] %v1276
  %v1280 = vld [vmem:[#allocation2] sm:$0xf]
  %s1281 = scalar_lea.vmem %s0, 64
  %v1282 = vld [vmem:[%s1281] sm:$0xff]
  %v1283 = vld [vmem:[%s1281 + $0x8] sm:$0xff]
  %v1284 = vld [vmem:[%s1] sm:$0xff]
  %v1285 = vld [vmem:[%s1 + $0x8] sm:$0xff]
  %v1286 = vld [vmem:[%s1 + $0x10] sm:$0xff]
  %v1287 = vld [vmem:[%s1 + $0x18] sm:$0xff]
  %v1288 = vld [vmem:[%s1 + $0x20] sm:$0xff]
  %v1289 = vld [vmem:[%s1 + $0x28] sm:$0xff]
  %v1290 = vld [vmem:[%s1 + $0x30] sm:$0xff]
  %v1291 = vld [vmem:[%s1 + $0x38] sm:$0xff]
  %v1292 = vld [vmem:[%s1 + $0x40] sm:$0xff]
  %v1293 = vld [vmem:[%s1 + $0x48] sm:$0xff]
  %v1294 = vld [vmem:[%s1 + $0x50] sm:$0xff]
  %v1295 = vld [vmem:[%s1 + $0x58] sm:$0xff]
  %v1296 = vld [vmem:[%s1 + $0x60] sm:$0xff]
  %v1297 = vld [vmem:[%s1 + $0x68] sm:$0xff]
  %v1298 = vld [vmem:[%s1 + $0x70] sm:$0xff]
  %v1299 = vld [vmem:[%s1 + $0x78] sm:$0xff]
  %v1300 = vld [vmem:[%s1 + $0x80] sm:$0xff]
  %v1301 = vld [vmem:[%s1 + $0x88] sm:$0xff]
  %v1302 = vld [vmem:[%s1 + $0x90] sm:$0xff]
  %v1303 = vld [vmem:[%s1 + $0x98] sm:$0xff]
  %v1304 = vld [vmem:[%s1 + $0xa0] sm:$0xff]
  %v1305 = vld [vmem:[%s1 + $0xa8] sm:$0xff]
  %v1306 = vld [vmem:[%s1 + $0xb0] sm:$0xff]
  %v1307 = vld [vmem:[%s1 + $0xb8] sm:$0xff]
  %v1308 = vld [vmem:[%s1 + $0xc0] sm:$0xff]
  %v1309 = vld [vmem:[%s1 + $0xc8] sm:$0xff]
  %v1310 = vld [vmem:[%s1 + $0xd0] sm:$0xff]
  %v1311 = vld [vmem:[%s1 + $0xd8] sm:$0xff]
  %v1312 = vld [vmem:[%s1 + $0xe0] sm:$0xff]
  %v1313 = vld [vmem:[%s1 + $0xe8] sm:$0xff]
  %v1314 = vld [vmem:[%s1 + $0xf0] sm:$0xff]
  %v1315 = vld [vmem:[%s1 + $0xf8] sm:$0xff]
  %v1348 = vunpack.c.l.b16 %v1284
  %v1349 = vunpack.c.h.b16 %v1284
  %v1350 = vunpack.c.l.b16 %v1285
  %v1351 = vunpack.c.h.b16 %v1285
  %v1352 = vunpack.c.l.b16 %v1286
  %v1353 = vunpack.c.h.b16 %v1286
  %v1354 = vunpack.c.l.b16 %v1287
  %v1355 = vunpack.c.h.b16 %v1287
  %v1356 = vunpack.c.l.b16 %v1288
  %v1357 = vunpack.c.h.b16 %v1288
  %v1358 = vunpack.c.l.b16 %v1289
  %v1359 = vunpack.c.h.b16 %v1289
  %v1360 = vunpack.c.l.b16 %v1290
  %v1361 = vunpack.c.h.b16 %v1290
  %v1362 = vunpack.c.l.b16 %v1291
  %v1363 = vunpack.c.h.b16 %v1291
  %v1364 = vunpack.c.l.b16 %v1292
  %v1365 = vunpack.c.h.b16 %v1292
  %v1366 = vunpack.c.l.b16 %v1293
  %v1367 = vunpack.c.h.b16 %v1293
  %v1368 = vunpack.c.l.b16 %v1294
  %v1369 = vunpack.c.h.b16 %v1294
  %v1370 = vunpack.c.l.b16 %v1295
  %v1371 = vunpack.c.h.b16 %v1295
  %v1372 = vunpack.c.l.b16 %v1296
  %v1373 = vunpack.c.h.b16 %v1296
  %v1374 = vunpack.c.l.b16 %v1297
  %v1375 = vunpack.c.h.b16 %v1297
  %v1376 = vunpack.c.l.b16 %v1298
  %v1377 = vunpack.c.h.b16 %v1298
  %v1378 = vunpack.c.l.b16 %v1299
  %v1379 = vunpack.c.h.b16 %v1299
  %v1380 = vunpack.c.l.b16 %v1300
  %v1381 = vunpack.c.h.b16 %v1300
  %v1382 = vunpack.c.l.b16 %v1301
  %v1383 = vunpack.c.h.b16 %v1301
  %v1384 = vunpack.c.l.b16 %v1302
  %v1385 = vunpack.c.h.b16 %v1302
  %v1386 = vunpack.c.l.b16 %v1303
  %v1387 = vunpack.c.h.b16 %v1303
  %v1388 = vunpack.c.l.b16 %v1304
  %v1389 = vunpack.c.h.b16 %v1304
  %v1390 = vunpack.c.l.b16 %v1305
  %v1391 = vunpack.c.h.b16 %v1305
  %v1392 = vunpack.c.l.b16 %v1306
  %v1393 = vunpack.c.h.b16 %v1306
  %v1394 = vunpack.c.l.b16 %v1307
  %v1395 = vunpack.c.h.b16 %v1307
  %v1396 = vunpack.c.l.b16 %v1308
  %v1397 = vunpack.c.h.b16 %v1308
  %v1398 = vunpack.c.l.b16 %v1309
  %v1399 = vunpack.c.h.b16 %v1309
  %v1400 = vunpack.c.l.b16 %v1310
  %v1401 = vunpack.c.h.b16 %v1310
  %v1402 = vunpack.c.l.b16 %v1311
  %v1403 = vunpack.c.h.b16 %v1311
  %v1404 = vunpack.c.l.b16 %v1312
  %v1405 = vunpack.c.h.b16 %v1312
  %v1406 = vunpack.c.l.b16 %v1313
  %v1407 = vunpack.c.h.b16 %v1313
  %v1408 = vunpack.c.l.b16 %v1314
  %v1409 = vunpack.c.h.b16 %v1314
  %v1410 = vunpack.c.l.b16 %v1315
  %v1411 = vunpack.c.h.b16 %v1315
  %v1412 = vpack.c.b16 %v1352, %v1348
  %v1413 = vpack.c.b16 %v1353, %v1349
  %v1414 = vpack.c.b16 %v1354, %v1350
  %v1415 = vpack.c.b16 %v1355, %v1351
  %v1416 = vpack.c.b16 %v1360, %v1356
  %v1417 = vpack.c.b16 %v1361, %v1357
  %v1418 = vpack.c.b16 %v1362, %v1358
  %v1419 = vpack.c.b16 %v1363, %v1359
  %v1420 = vpack.c.b16 %v1368, %v1364
  %v1421 = vpack.c.b16 %v1369, %v1365
  %v1422 = vpack.c.b16 %v1370, %v1366
  %v1423 = vpack.c.b16 %v1371, %v1367
  %v1424 = vpack.c.b16 %v1376, %v1372
  %v1425 = vpack.c.b16 %v1377, %v1373
  %v1426 = vpack.c.b16 %v1378, %v1374
  %v1427 = vpack.c.b16 %v1379, %v1375
  %v1428 = vpack.c.b16 %v1384, %v1380
  %v1429 = vpack.c.b16 %v1385, %v1381
  %v1430 = vpack.c.b16 %v1386, %v1382
  %v1431 = vpack.c.b16 %v1387, %v1383
  %v1432 = vpack.c.b16 %v1392, %v1388
  %v1433 = vpack.c.b16 %v1393, %v1389
  %v1434 = vpack.c.b16 %v1394, %v1390
  %v1435 = vpack.c.b16 %v1395, %v1391
  %v1436 = vpack.c.b16 %v1400, %v1396
  %v1437 = vpack.c.b16 %v1401, %v1397
  %v1438 = vpack.c.b16 %v1402, %v1398
  %v1439 = vpack.c.b16 %v1403, %v1399
  %v1440 = vpack.c.b16 %v1408, %v1404
  %v1441 = vpack.c.b16 %v1409, %v1405
  %v1442 = vpack.c.b16 %v1410, %v1406
  %v1443 = vpack.c.b16 %v1411, %v1407
  %1476 = vmatprep.subr.bf16.mxu0 %v1413
  %1477 = vmatpush1.bf16.msra.mxu0 %v1412
  %1478 = vmatprep.subr.bf16.mxu0 %v1417
  %1479 = vmatpush1.bf16.msra.mxu0 %v1416
  %1480 = vmatprep.subr.bf16.mxu0 %v1421
  %1481 = vmatpush1.bf16.msra.mxu0 %v1420
  %1482 = vmatprep.subr.bf16.mxu0 %v1425
  %1483 = vmatpush1.bf16.msra.mxu0 %v1424
  %1484 = vmatprep.subr.bf16.mxu0 %v1429
  %1485 = vmatpush1.bf16.msra.mxu0 %v1428
  %1486 = vmatprep.subr.bf16.mxu0 %v1433
  %1487 = vmatpush1.bf16.msra.mxu0 %v1432
  %1488 = vmatprep.subr.bf16.mxu0 %v1437
  %1489 = vmatpush1.bf16.msra.mxu0 %v1436
  %1490 = vmatprep.subr.bf16.mxu0 %v1441
  %1491 = vmatpush1.bf16.msra.mxu0 %v1440
  %1492 = vmatprep.subr.bf16.mxu0 0
  %1493 = vmatpush1.bf16.msra.mxu0 0
  %1494 = vmatprep.subr.bf16.mxu0 0
  %1495 = vmatpush1.bf16.msra.mxu0 0
  %1496 = vmatprep.subr.bf16.mxu0 0
  %1497 = vmatpush1.bf16.msra.mxu0 0
  %1498 = vmatprep.subr.bf16.mxu0 0
  %1499 = vmatpush1.bf16.msra.mxu0 0
  %1500 = vmatprep.subr.bf16.mxu0 0
  %1501 = vmatpush1.bf16.msra.mxu0 0
  %1502 = vmatprep.subr.bf16.mxu0 0
  %1503 = vmatpush1.bf16.msra.mxu0 0
  %1504 = vmatprep.subr.bf16.mxu0 0
  %1505 = vmatpush1.bf16.msra.mxu0 0
  %1506 = vmatprep.subr.bf16.mxu0 0
  %1507 = vmatpush1.bf16.msra.mxu0 0
  %1508 = vmatprep.mubr.bf16.mxu0 0
  %1509 = vmatmul.mubr.bf16.gmra.mrb[0].mxu0 %v1280
  %v1510 = vpop.f32.mrb[0].mxu0
  %v1511 = vadd.f32 0.0, %v1510
  %v1512 = vpop.f32.mrb[0].mxu0
  %v1513 = vadd.f32 0.0, %v1512
  %v1514 = vpop.f32.mrb[0].mxu0
  %v1515 = vpop.f32.mrb[0].mxu0
  %1516 = vdwg.mxu0
  %1517 = vmatprep.subr.bf16.mxu0 %v1415
  %1518 = vmatpush1.bf16.msra.mxu0 %v1414
  %1519 = vmatprep.subr.bf16.mxu0 %v1419
  %1520 = vmatpush1.bf16.msra.mxu0 %v1418
  %1521 = vmatprep.subr.bf16.mxu0 %v1423
  %1522 = vmatpush1.bf16.msra.mxu0 %v1422
  %1523 = vmatprep.subr.bf16.mxu0 %v1427
  %1524 = vmatpush1.bf16.msra.mxu0 %v1426
  %1525 = vmatprep.subr.bf16.mxu0 %v1431
  %1526 = vmatpush1.bf16.msra.mxu0 %v1430
  %1527 = vmatprep.subr.bf16.mxu0 %v1435
  %1528 = vmatpush1.bf16.msra.mxu0 %v1434
  %1529 = vmatprep.subr.bf16.mxu0 %v1439
  %1530 = vmatpush1.bf16.msra.mxu0 %v1438
  %1531 = vmatprep.subr.bf16.mxu0 %v1443
  %1532 = vmatpush1.bf16.msra.mxu0 %v1442
  %1533 = vmatprep.subr.bf16.mxu0 0
  %1534 = vmatpush1.bf16.msra.mxu0 0
  %1535 = vmatprep.subr.bf16.mxu0 0
  %1536 = vmatpush1.bf16.msra.mxu0 0
  %1537 = vmatprep.subr.bf16.mxu0 0
  %1538 = vmatpush1.bf16.msra.mxu0 0
  %1539 = vmatprep.subr.bf16.mxu0 0
  %1540 = vmatpush1.bf16.msra.mxu0 0
  %1541 = vmatprep.subr.bf16.mxu0 0
  %1542 = vmatpush1.bf16.msra.mxu0 0
  %1543 = vmatprep.subr.bf16.mxu0 0
  %1544 = vmatpush1.bf16.msra.mxu0 0
  %1545 = vmatprep.subr.bf16.mxu0 0
  %1546 = vmatpush1.bf16.msra.mxu0 0
  %1547 = vmatprep.subr.bf16.mxu0 0
  %1548 = vmatpush1.bf16.msra.mxu0 0
  %1549 = vmatprep.mubr.bf16.mxu0 0
  %1550 = vmatmul.mubr.bf16.gmra.mrb[0].mxu0 %v1280
  %v1551 = vpop.f32.mrb[0].mxu0
  %v1552 = vadd.f32 0.0, %v1551
  %v1553 = vpop.f32.mrb[0].mxu0
  %v1554 = vadd.f32 0.0, %v1553
  %v1555 = vpop.f32.mrb[0].mxu0
  %v1556 = vpop.f32.mrb[0].mxu0
  %1557 = vdwg.mxu0
  %v1558 = vunpack.c.l.bf16 %v1282
  %v1559 = vunpack.c.h.bf16 %v1282
  %v1560 = vunpack.c.l.bf16 %v1283
  %v1561 = vunpack.c.h.bf16 %v1283
  %v1562 = vadd.f32 %v1558, %v1511
  %v1563 = vadd.f32 %v1559, %v1513
  %v1564 = vadd.f32 %v1560, %v1552
  %v1565 = vadd.f32 %v1561, %v1554
  %v1566 = vxor.u32 %v1562, 2147483648
  %v1567 = vxor.u32 %v1563, 2147483648
  %v1568 = vxor.u32 %v1564, 2147483648
  %v1569 = vmul.f32 %v1566, 1.442695
  %v1570 = vpow.pop %v1569
  %v1571 = vmul.f32 %v1567, 1.442695
  %v1572 = vpow.pop %v1571
  %v1573 = vmul.f32 %v1568, 1.442695
  %v1574 = vpow.pop %v1573
  %v1575 = vadd.f32 %v1570, 1.0
  %v1576 = vadd.f32 %v1572, 1.0
  %v1577 = vadd.f32 %v1574, 1.0
  %v1578 = vrcp.pop %v1575
  %v1579 = vmul.f32 1.0, %v1578
  %v1580 = vrcp.pop %v1576
  %v1581 = vmul.f32 1.0, %v1580
  %v1582 = vrcp.pop %v1577
  %v1583 = vmul.f32 1.0, %v1582
  %v1584 = vtanh.pop %v1565
  %v1585 = vld [vmem:[#allocation3] sm:$0xff]
  %v1586 = vmul.f32 %v1581, %v1585
  %v1587 = vmul.f32 %v1579, %v1584
  %v1588 = vadd.f32 %v1586, %v1587
  %v1589 = vtanh.pop %v1588
  %v1590 = vmul.f32 %v1583, %v1589
  %1591 = vst [vmem:[#allocation3] sm:$0xff] %v1588
  %v1592 = vpack.c.bf16 %v1590, %v1590
  %1593 = vst [vmem:[#allocation2] sm:$0xf] %v1592
  %s1594 = scalar_lea.vmem %s2, 16
  %1595 = vst [vmem:[%s1594] sm:$0xf] %v1592
  %v1596 = vld [vmem:[#allocation2] sm:$0xf]
  %s1597 = scalar_lea.vmem %s0, 80
  %v1598 = vld [vmem:[%s1597] sm:$0xff]
  %v1599 = vld [vmem:[%s1597 + $0x8] sm:$0xff]
  %v1600 = vld [vmem:[%s1] sm:$0xff]
  %v1601 = vld [vmem:[%s1 + $0x8] sm:$0xff]
  %v1602 = vld [vmem:[%s1 + $0x10] sm:$0xff]
  %v1603 = vld [vmem:[%s1 + $0x18] sm:$0xff]
  %v1604 = vld [vmem:[%s1 + $0x20] sm:$0xff]
  %v1605 = vld [vmem:[%s1 + $0x28] sm:$0xff]
  %v1606 = vld [vmem:[%s1 + $0x30] sm:$0xff]
  %v1607 = vld [vmem:[%s1 + $0x38] sm:$0xff]
  %v1608 = vld [vmem:[%s1 + $0x40] sm:$0xff]
  %v1609 = vld [vmem:[%s1 + $0x48] sm:$0xff]
  %v1610 = vld [vmem:[%s1 + $0x50] sm:$0xff]
  %v1611 = vld [vmem:[%s1 + $0x58] sm:$0xff]
  %v1612 = vld [vmem:[%s1 + $0x60] sm:$0xff]
  %v1613 = vld [vmem:[%s1 + $0x68] sm:$0xff]
  %v1614 = vld [vmem:[%s1 + $0x70] sm:$0xff]
  %v1615 = vld [vmem:[%s1 + $0x78] sm:$0xff]
  %v1616 = vld [vmem:[%s1 + $0x80] sm:$0xff]
  %v1617 = vld [vmem:[%s1 + $0x88] sm:$0xff]
  %v1618 = vld [vmem:[%s1 + $0x90] sm:$0xff]
  %v1619 = vld [vmem:[%s1 + $0x98] sm:$0xff]
  %v1620 = vld [vmem:[%s1 + $0xa0] sm:$0xff]
  %v1621 = vld [vmem:[%s1 + $0xa8] sm:$0xff]
  %v1622 = vld [vmem:[%s1 + $0xb0] sm:$0xff]
  %v1623 = vld [vmem:[%s1 + $0xb8] sm:$0xff]
  %v1624 = vld [vmem:[%s1 + $0xc0] sm:$0xff]
  %v1625 = vld [vmem:[%s1 + $0xc8] sm:$0xff]
  %v1626 = vld [vmem:[%s1 + $0xd0] sm:$0xff]
  %v1627 = vld [vmem:[%s1 + $0xd8] sm:$0xff]
  %v1628 = vld [vmem:[%s1 + $0xe0] sm:$0xff]
  %v1629 = vld [vmem:[%s1 + $0xe8] sm:$0xff]
  %v1630 = vld [vmem:[%s1 + $0xf0] sm:$0xff]
  %v1631 = vld [vmem:[%s1 + $0xf8] sm:$0xff]
  %v1664 = vunpack.c.l.b16 %v1600
  %v1665 = vunpack.c.h.b16 %v1600
  %v1666 = vunpack.c.l.b16 %v1601
  %v1667 = vunpack.c.h.b16 %v1601
  %v1668 = vunpack.c.l.b16 %v1602
  %v1669 = vunpack.c.h.b16 %v1602
  %v1670 = vunpack.c.l.b16 %v1603
  %v1671 = vunpack.c.h.b16 %v1603
  %v1672 = vunpack.c.l.b16 %v1604
  %v1673 = vunpack.c.h.b16 %v1604
  %v1674 = vunpack.c.l.b16 %v1605
  %v1675 = vunpack.c.h.b16 %v1605
  %v1676 = vunpack.c.l.b16 %v1606
  %v1677 = vunpack.c.h.b16 %v1606
  %v1678 = vunpack.c.l.b16 %v1607
  %v1679 = vunpack.c.h.b16 %v1607
  %v1680 = vunpack.c.l.b16 %v1608
  %v1681 = vunpack.c.h.b16 %v1608
  %v1682 = vunpack.c.l.b16 %v1609
  %v1683 = vunpack.c.h.b16 %v1609
  %v1684 = vunpack.c.l.b16 %v1610
  %v1685 = vunpack.c.h.b16 %v1610
  %v1686 = vunpack.c.l.b16 %v1611
  %v1687 = vunpack.c.h.b16 %v1611
  %v1688 = vunpack.c.l.b16 %v1612
  %v1689 = vunpack.c.h.b16 %v1612
  %v1690 = vunpack.c.l.b16 %v1613
  %v1691 = vunpack.c.h.b16 %v1613
  %v1692 = vunpack.c.l.b16 %v1614
  %v1693 = vunpack.c.h.b16 %v1614
  %v1694 = vunpack.c.l.b16 %v1615
  %v1695 = vunpack.c.h.b16 %v1615
  %v1696 = vunpack.c.l.b16 %v1616
  %v1697 = vunpack.c.h.b16 %v1616
  %v1698 = vunpack.c.l.b16 %v1617
  %v1699 = vunpack.c.h.b16 %v1617
  %v1700 = vunpack.c.l.b16 %v1618
  %v1701 = vunpack.c.h.b16 %v1618
  %v1702 = vunpack.c.l.b16 %v1619
  %v1703 = vunpack.c.h.b16 %v1619
  %v1704 = vunpack.c.l.b16 %v1620
  %v1705 = vunpack.c.h.b16 %v1620
  %v1706 = vunpack.c.l.b16 %v1621
  %v1707 = vunpack.c.h.b16 %v1621
  %v1708 = vunpack.c.l.b16 %v1622
  %v1709 = vunpack.c.h.b16 %v1622
  %v1710 = vunpack.c.l.b16 %v1623
  %v1711 = vunpack.c.h.b16 %v1623
  %v1712 = vunpack.c.l.b16 %v1624
  %v1713 = vunpack.c.h.b16 %v1624
  %v1714 = vunpack.c.l.b16 %v1625
  %v1715 = vunpack.c.h.b16 %v1625
  %v1716 = vunpack.c.l.b16 %v1626
  %v1717 = vunpack.c.h.b16 %v1626
  %v1718 = vunpack.c.l.b16 %v1627
  %v1719 = vunpack.c.h.b16 %v1627
  %v1720 = vunpack.c.l.b16 %v1628
  %v1721 = vunpack.c.h.b16 %v1628
  %v1722 = vunpack.c.l.b16 %v1629
  %v1723 = vunpack.c.h.b16 %v1629
  %v1724 = vunpack.c.l.b16 %v1630
  %v1725 = vunpack.c.h.b16 %v1630
  %v1726 = vunpack.c.l.b16 %v1631
  %v1727 = vunpack.c.h.b16 %v1631
  %v1728 = vpack.c.b16 %v1668, %v1664
  %v1729 = vpack.c.b16 %v1669, %v1665
  %v1730 = vpack.c.b16 %v1670, %v1666
  %v1731 = vpack.c.b16 %v1671, %v1667
  %v1732 = vpack.c.b16 %v1676, %v1672
  %v1733 = vpack.c.b16 %v1677, %v1673
  %v1734 = vpack.c.b16 %v1678, %v1674
  %v1735 = vpack.c.b16 %v1679, %v1675
  %v1736 = vpack.c.b16 %v1684, %v1680
  %v1737 = vpack.c.b16 %v1685, %v1681
  %v1738 = vpack.c.b16 %v1686, %v1682
  %v1739 = vpack.c.b16 %v1687, %v1683
  %v1740 = vpack.c.b16 %v1692, %v1688
  %v1741 = vpack.c.b16 %v1693, %v1689
  %v1742 = vpack.c.b16 %v1694, %v1690
  %v1743 = vpack.c.b16 %v1695, %v1691
  %v1744 = vpack.c.b16 %v1700, %v1696
  %v1745 = vpack.c.b16 %v1701, %v1697
  %v1746 = vpack.c.b16 %v1702, %v1698
  %v1747 = vpack.c.b16 %v1703, %v1699
  %v1748 = vpack.c.b16 %v1708, %v1704
  %v1749 = vpack.c.b16 %v1709, %v1705
  %v1750 = vpack.c.b16 %v1710, %v1706
  %v1751 = vpack.c.b16 %v1711, %v1707
  %v1752 = vpack.c.b16 %v1716, %v1712
  %v1753 = vpack.c.b16 %v1717, %v1713
  %v1754 = vpack.c.b16 %v1718, %v1714
  %v1755 = vpack.c.b16 %v1719, %v1715
  %v1756 = vpack.c.b16 %v1724, %v1720
  %v1757 = vpack.c.b16 %v1725, %v1721
  %v1758 = vpack.c.b16 %v1726, %v1722
  %v1759 = vpack.c.b16 %v1727, %v1723
  %1792 = vmatprep.subr.bf16.mxu0 %v1729
  %1793 = vmatpush1.bf16.msra.mxu0 %v1728
  %1794 = vmatprep.subr.bf16.mxu0 %v1733
  %1795 = vmatpush1.bf16.msra.mxu0 %v1732
  %1796 = vmatprep.subr.bf16.mxu0 %v1737
  %1797 = vmatpush1.bf16.msra.mxu0 %v1736
  %1798 = vmatprep.subr.bf16.mxu0 %v1741
  %1799 = vmatpush1.bf16.msra.mxu0 %v1740
  %1800 = vmatprep.subr.bf16.mxu0 %v1745
  %1801 = vmatpush1.bf16.msra.mxu0 %v1744
  %1802 = vmatprep.subr.bf16.mxu0 %v1749
  %1803 = vmatpush1.bf16.msra.mxu0 %v1748
  %1804 = vmatprep.subr.bf16.mxu0 %v1753
  %1805 = vmatpush1.bf16.msra.mxu0 %v1752
  %1806 = vmatprep.subr.bf16.mxu0 %v1757
  %1807 = vmatpush1.bf16.msra.mxu0 %v1756
  %1808 = vmatprep.subr.bf16.mxu0 0
  %1809 = vmatpush1.bf16.msra.mxu0 0
  %1810 = vmatprep.subr.bf16.mxu0 0
  %1811 = vmatpush1.bf16.msra.mxu0 0
  %1812 = vmatprep.subr.bf16.mxu0 0
  %1813 = vmatpush1.bf16.msra.mxu0 0
  %1814 = vmatprep.subr.bf16.mxu0 0
  %1815 = vmatpush1.bf16.msra.mxu0 0
  %1816 = vmatprep.subr.bf16.mxu0 0
  %1817 = vmatpush1.bf16.msra.mxu0 0
  %1818 = vmatprep.subr.bf16.mxu0 0
  %1819 = vmatpush1.bf16.msra.mxu0 0
  %1820 = vmatprep.subr.bf16.mxu0 0
  %1821 = vmatpush1.bf16.msra.mxu0 0
  %1822 = vmatprep.subr.bf16.mxu0 0
  %1823 = vmatpush1.bf16.msra.mxu0 0
  %1824 = vmatprep.mubr.bf16.mxu0 0
  %1825 = vmatmul.mubr.bf16.gmra.mrb[0].mxu0 %v1596
  %v1826 = vpop.f32.mrb[0].mxu0
  %v1827 = vadd.f32 0.0, %v1826
  %v1828 = vpop.f32.mrb[0].mxu0
  %v1829 = vadd.f32 0.0, %v1828
  %v1830 = vpop.f32.mrb[0].mxu0
  %v1831 = vpop.f32.mrb[0].mxu0
  %1832 = vdwg.mxu0
  %1833 = vmatprep.subr.bf16.mxu0 %v1731
  %1834 = vmatpush1.bf16.msra.mxu0 %v1730
  %1835 = vmatprep.subr.bf16.mxu0 %v1735
  %1836 = vmatpush1.bf16.msra.mxu0 %v1734
  %1837 = vmatprep.subr.bf16.mxu0 %v1739
  %1838 = vmatpush1.bf16.msra.mxu0 %v1738
  %1839 = vmatprep.subr.bf16.mxu0 %v1743
  %1840 = vmatpush1.bf16.msra.mxu0 %v1742
  %1841 = vmatprep.subr.bf16.mxu0 %v1747
  %1842 = vmatpush1.bf16.msra.mxu0 %v1746
  %1843 = vmatprep.subr.bf16.mxu0 %v1751
  %1844 = vmatpush1.bf16.msra.mxu0 %v1750
  %1845 = vmatprep.subr.bf16.mxu0 %v1755
  %1846 = vmatpush1.bf16.msra.mxu0 %v1754
  %1847 = vmatprep.subr.bf16.mxu0 %v1759
  %1848 = vmatpush1.bf16.msra.mxu0 %v1758
  %1849 = vmatprep.subr.bf16.mxu0 0
  %1850 = vmatpush1.bf16.msra.mxu0 0
  %1851 = vmatprep.subr.bf16.mxu0 0
  %1852 = vmatpush1.bf16.msra.mxu0 0
  %1853 = vmatprep.subr.bf16.mxu0 0
  %1854 = vmatpush1.bf16.msra.mxu0 0
  %1855 = vmatprep.subr.bf16.mxu0 0
  %1856 = vmatpush1.bf16.msra.mxu0 0
  %1857 = vmatprep.subr.bf16.mxu0 0
  %1858 = vmatpush1.bf16.msra.mxu0 0
  %1859 = vmatprep.subr.bf16.mxu0 0
  %1860 = vmatpush1.bf16.msra.mxu0 0
  %1861 = vmatprep.subr.bf16.mxu0 0
  %1862 = vmatpush1.bf16.msra.mxu0 0
  %1863 = vmatprep.subr.bf16.mxu0 0
  %1864 = vmatpush1.bf16.msra.mxu0 0
  %1865 = vmatprep.mubr.bf16.mxu0 0
  %1866 = vmatmul.mubr.bf16.gmra.mrb[0].mxu0 %v1596
  %v1867 = vpop.f32.mrb[0].mxu0
  %v1868 = vadd.f32 0.0, %v1867
  %v1869 = vpop.f32.mrb[0].mxu0
  %v1870 = vadd.f32 0.0, %v1869
  %v1871 = vpop.f32.mrb[0].mxu0
  %v1872 = vpop.f32.mrb[0].mxu0
  %1873 = vdwg.mxu0
  %v1874 = vunpack.c.l.bf16 %v1598
  %v1875 = vunpack.c.h.bf16 %v1598
  %v1876 = vunpack.c.l.bf16 %v1599
  %v1877 = vunpack.c.h.bf16 %v1599
  %v1878 = vadd.f32 %v1874, %v1827
  %v1879 = vadd.f32 %v1875, %v1829
  %v1880 = vadd.f32 %v1876, %v1868
  %v1881 = vadd.f32 %v1877, %v1870
  %v1882 = vxor.u32 %v1878, 2147483648
  %v1883 = vxor.u32 %v1879, 2147483648
  %v1884 = vxor.u32 %v1880, 2147483648
  %v1885 = vmul.f32 %v1882, 1.442695
  %v1886 = vpow.pop %v1885
  %v1887 = vmul.f32 %v1883, 1.442695
  %v1888 = vpow.pop %v1887
  %v1889 = vmul.f32 %v1884, 1.442695
  %v1890 = vpow.pop %v1889
  %v1891 = vadd.f32 %v1886, 1.0
  %v1892 = vadd.f32 %v1888, 1.0
  %v1893 = vadd.f32 %v1890, 1.0
  %v1894 = vrcp.pop %v1891
  %v1895 = vmul.f32 1.0, %v1894
  %v1896 = vrcp.pop %v1892
  %v1897 = vmul.f32 1.0, %v1896
  %v1898 = vrcp.pop %v1893
  %v1899 = vmul.f32 1.0, %v1898
  %v1900 = vtanh.pop %v1881
  %v1901 = vld [vmem:[#allocation3] sm:$0xff]
  %v1902 = vmul.f32 %v1897, %v1901
  %v1903 = vmul.f32 %v1895, %v1900
  %v1904 = vadd.f32 %v1902, %v1903
  %v1905 = vtanh.pop %v1904
  %v1906 = vmul.f32 %v1899, %v1905
  %1907 = vst [vmem:[#allocation3] sm:$0xff] %v1904
  %v1908 = vpack.c.bf16 %v1906, %v1906
  %1909 = vst [vmem:[#allocation2] sm:$0xf] %v1908
  %s1910 = scalar_lea.vmem %s2, 20
  %1911 = vst [vmem:[%s1910] sm:$0xf] %v1908
  %v1912 = vld [vmem:[#allocation2] sm:$0xf]
  %s1913 = scalar_lea.vmem %s0, 96
  %v1914 = vld [vmem:[%s1913] sm:$0xff]
  %v1915 = vld [vmem:[%s1913 + $0x8] sm:$0xff]
  %v1916 = vld [vmem:[%s1] sm:$0xff]
  %v1917 = vld [vmem:[%s1 + $0x8] sm:$0xff]
  %v1918 = vld [vmem:[%s1 + $0x10] sm:$0xff]
  %v1919 = vld [vmem:[%s1 + $0x18] sm:$0xff]
  %v1920 = vld [vmem:[%s1 + $0x20] sm:$0xff]
  %v1921 = vld [vmem:[%s1 + $0x28] sm:$0xff]
  %v1922 = vld [vmem:[%s1 + $0x30] sm:$0xff]
  %v1923 = vld [vmem:[%s1 + $0x38] sm:$0xff]
  %v1924 = vld [vmem:[%s1 + $0x40] sm:$0xff]
  %v1925 = vld [vmem:[%s1 + $0x48] sm:$0xff]
  %v1926 = vld [vmem:[%s1 + $0x50] sm:$0xff]
  %v1927 = vld [vmem:[%s1 + $0x58] sm:$0xff]
  %v1928 = vld [vmem:[%s1 + $0x60] sm:$0xff]
  %v1929 = vld [vmem:[%s1 + $0x68] sm:$0xff]
  %v1930 = vld [vmem:[%s1 + $0x70] sm:$0xff]
  %v1931 = vld [vmem:[%s1 + $0x78] sm:$0xff]
  %v1932 = vld [vmem:[%s1 + $0x80] sm:$0xff]
  %v1933 = vld [vmem:[%s1 + $0x88] sm:$0xff]
  %v1934 = vld [vmem:[%s1 + $0x90] sm:$0xff]
  %v1935 = vld [vmem:[%s1 + $0x98] sm:$0xff]
  %v1936 = vld [vmem:[%s1 + $0xa0] sm:$0xff]
  %v1937 = vld [vmem:[%s1 + $0xa8] sm:$0xff]
  %v1938 = vld [vmem:[%s1 + $0xb0] sm:$0xff]
  %v1939 = vld [vmem:[%s1 + $0xb8] sm:$0xff]
  %v1940 = vld [vmem:[%s1 + $0xc0] sm:$0xff]
  %v1941 = vld [vmem:[%s1 + $0xc8] sm:$0xff]
  %v1942 = vld [vmem:[%s1 + $0xd0] sm:$0xff]
  %v1943 = vld [vmem:[%s1 + $0xd8] sm:$0xff]
  %v1944 = vld [vmem:[%s1 + $0xe0] sm:$0xff]
  %v1945 = vld [vmem:[%s1 + $0xe8] sm:$0xff]
  %v1946 = vld [vmem:[%s1 + $0xf0] sm:$0xff]
  %v1947 = vld [vmem:[%s1 + $0xf8] sm:$0xff]
  %v1980 = vunpack.c.l.b16 %v1916
  %v1981 = vunpack.c.h.b16 %v1916
  %v1982 = vunpack.c.l.b16 %v1917
  %v1983 = vunpack.c.h.b16 %v1917
  %v1984 = vunpack.c.l.b16 %v1918
  %v1985 = vunpack.c.h.b16 %v1918
  %v1986 = vunpack.c.l.b16 %v1919
  %v1987 = vunpack.c.h.b16 %v1919
  %v1988 = vunpack.c.l.b16 %v1920
  %v1989 = vunpack.c.h.b16 %v1920
  %v1990 = vunpack.c.l.b16 %v1921
  %v1991 = vunpack.c.h.b16 %v1921
  %v1992 = vunpack.c.l.b16 %v1922
  %v1993 = vunpack.c.h.b16 %v1922
  %v1994 = vunpack.c.l.b16 %v1923
  %v1995 = vunpack.c.h.b16 %v1923
  %v1996 = vunpack.c.l.b16 %v1924
  %v1997 = vunpack.c.h.b16 %v1924
  %v1998 = vunpack.c.l.b16 %v1925
  %v1999 = vunpack.c.h.b16 %v1925
  %v2000 = vunpack.c.l.b16 %v1926
  %v2001 = vunpack.c.h.b16 %v1926
  %v2002 = vunpack.c.l.b16 %v1927
  %v2003 = vunpack.c.h.b16 %v1927
  %v2004 = vunpack.c.l.b16 %v1928
  %v2005 = vunpack.c.h.b16 %v1928
  %v2006 = vunpack.c.l.b16 %v1929
  %v2007 = vunpack.c.h.b16 %v1929
  %v2008 = vunpack.c.l.b16 %v1930
  %v2009 = vunpack.c.h.b16 %v1930
  %v2010 = vunpack.c.l.b16 %v1931
  %v2011 = vunpack.c.h.b16 %v1931
  %v2012 = vunpack.c.l.b16 %v1932
  %v2013 = vunpack.c.h.b16 %v1932
  %v2014 = vunpack.c.l.b16 %v1933
  %v2015 = vunpack.c.h.b16 %v1933
  %v2016 = vunpack.c.l.b16 %v1934
  %v2017 = vunpack.c.h.b16 %v1934
  %v2018 = vunpack.c.l.b16 %v1935
  %v2019 = vunpack.c.h.b16 %v1935
  %v2020 = vunpack.c.l.b16 %v1936
  %v2021 = vunpack.c.h.b16 %v1936
  %v2022 = vunpack.c.l.b16 %v1937
  %v2023 = vunpack.c.h.b16 %v1937
  %v2024 = vunpack.c.l.b16 %v1938
  %v2025 = vunpack.c.h.b16 %v1938
  %v2026 = vunpack.c.l.b16 %v1939
  %v2027 = vunpack.c.h.b16 %v1939
  %v2028 = vunpack.c.l.b16 %v1940
  %v2029 = vunpack.c.h.b16 %v1940
  %v2030 = vunpack.c.l.b16 %v1941
  %v2031 = vunpack.c.h.b16 %v1941
  %v2032 = vunpack.c.l.b16 %v1942
  %v2033 = vunpack.c.h.b16 %v1942
  %v2034 = vunpack.c.l.b16 %v1943
  %v2035 = vunpack.c.h.b16 %v1943
  %v2036 = vunpack.c.l.b16 %v1944
  %v2037 = vunpack.c.h.b16 %v1944
  %v2038 = vunpack.c.l.b16 %v1945
  %v2039 = vunpack.c.h.b16 %v1945
  %v2040 = vunpack.c.l.b16 %v1946
  %v2041 = vunpack.c.h.b16 %v1946
  %v2042 = vunpack.c.l.b16 %v1947
  %v2043 = vunpack.c.h.b16 %v1947
  %v2044 = vpack.c.b16 %v1984, %v1980
  %v2045 = vpack.c.b16 %v1985, %v1981
  %v2046 = vpack.c.b16 %v1986, %v1982
  %v2047 = vpack.c.b16 %v1987, %v1983
  %v2048 = vpack.c.b16 %v1992, %v1988
  %v2049 = vpack.c.b16 %v1993, %v1989
  %v2050 = vpack.c.b16 %v1994, %v1990
  %v2051 = vpack.c.b16 %v1995, %v1991
  %v2052 = vpack.c.b16 %v2000, %v1996
  %v2053 = vpack.c.b16 %v2001, %v1997
  %v2054 = vpack.c.b16 %v2002, %v1998
  %v2055 = vpack.c.b16 %v2003, %v1999
  %v2056 = vpack.c.b16 %v2008, %v2004
  %v2057 = vpack.c.b16 %v2009, %v2005
  %v2058 = vpack.c.b16 %v2010, %v2006
  %v2059 = vpack.c.b16 %v2011, %v2007
  %v2060 = vpack.c.b16 %v2016, %v2012
  %v2061 = vpack.c.b16 %v2017, %v2013
  %v2062 = vpack.c.b16 %v2018, %v2014
  %v2063 = vpack.c.b16 %v2019, %v2015
  %v2064 = vpack.c.b16 %v2024, %v2020
  %v2065 = vpack.c.b16 %v2025, %v2021
  %v2066 = vpack.c.b16 %v2026, %v2022
  %v2067 = vpack.c.b16 %v2027, %v2023
  %v2068 = vpack.c.b16 %v2032, %v2028
  %v2069 = vpack.c.b16 %v2033, %v2029
  %v2070 = vpack.c.b16 %v2034, %v2030
  %v2071 = vpack.c.b16 %v2035, %v2031
  %v2072 = vpack.c.b16 %v2040, %v2036
  %v2073 = vpack.c.b16 %v2041, %v2037
  %v2074 = vpack.c.b16 %v2042, %v2038
  %v2075 = vpack.c.b16 %v2043, %v2039
  %2108 = vmatprep.subr.bf16.mxu0 %v2045
  %2109 = vmatpush1.bf16.msra.mxu0 %v2044
  %2110 = vmatprep.subr.bf16.mxu0 %v2049
  %2111 = vmatpush1.bf16.msra.mxu0 %v2048
  %2112 = vmatprep.subr.bf16.mxu0 %v2053
  %2113 = vmatpush1.bf16.msra.mxu0 %v2052
  %2114 = vmatprep.subr.bf16.mxu0 %v2057
  %2115 = vmatpush1.bf16.msra.mxu0 %v2056
  %2116 = vmatprep.subr.bf16.mxu0 %v2061
  %2117 = vmatpush1.bf16.msra.mxu0 %v2060
  %2118 = vmatprep.subr.bf16.mxu0 %v2065
  %2119 = vmatpush1.bf16.msra.mxu0 %v2064
  %2120 = vmatprep.subr.bf16.mxu0 %v2069
  %2121 = vmatpush1.bf16.msra.mxu0 %v2068
  %2122 = vmatprep.subr.bf16.mxu0 %v2073
  %2123 = vmatpush1.bf16.msra.mxu0 %v2072
  %2124 = vmatprep.subr.bf16.mxu0 0
  %2125 = vmatpush1.bf16.msra.mxu0 0
  %2126 = vmatprep.subr.bf16.mxu0 0
  %2127 = vmatpush1.bf16.msra.mxu0 0
  %2128 = vmatprep.subr.bf16.mxu0 0
  %2129 = vmatpush1.bf16.msra.mxu0 0
  %2130 = vmatprep.subr.bf16.mxu0 0
  %2131 = vmatpush1.bf16.msra.mxu0 0
  %2132 = vmatprep.subr.bf16.mxu0 0
  %2133 = vmatpush1.bf16.msra.mxu0 0
  %2134 = vmatprep.subr.bf16.mxu0 0
  %2135 = vmatpush1.bf16.msra.mxu0 0
  %2136 = vmatprep.subr.bf16.mxu0 0
  %2137 = vmatpush1.bf16.msra.mxu0 0
  %2138 = vmatprep.subr.bf16.mxu0 0
  %2139 = vmatpush1.bf16.msra.mxu0 0
  %2140 = vmatprep.mubr.bf16.mxu0 0
  %2141 = vmatmul.mubr.bf16.gmra.mrb[0].mxu0 %v1912
  %v2142 = vpop.f32.mrb[0].mxu0
  %v2143 = vadd.f32 0.0, %v2142
  %v2144 = vpop.f32.mrb[0].mxu0
  %v2145 = vadd.f32 0.0, %v2144
  %v2146 = vpop.f32.mrb[0].mxu0
  %v2147 = vpop.f32.mrb[0].mxu0
  %2148 = vdwg.mxu0
  %2149 = vmatprep.subr.bf16.mxu0 %v2047
  %2150 = vmatpush1.bf16.msra.mxu0 %v2046
  %2151 = vmatprep.subr.bf16.mxu0 %v2051
  %2152 = vmatpush1.bf16.msra.mxu0 %v2050
  %2153 = vmatprep.subr.bf16.mxu0 %v2055
  %2154 = vmatpush1.bf16.msra.mxu0 %v2054
  %2155 = vmatprep.subr.bf16.mxu0 %v2059
  %2156 = vmatpush1.bf16.msra.mxu0 %v2058
  %2157 = vmatprep.subr.bf16.mxu0 %v2063
  %2158 = vmatpush1.bf16.msra.mxu0 %v2062
  %2159 = vmatprep.subr.bf16.mxu0 %v2067
  %2160 = vmatpush1.bf16.msra.mxu0 %v2066
  %2161 = vmatprep.subr.bf16.mxu0 %v2071
  %2162 = vmatpush1.bf16.msra.mxu0 %v2070
  %2163 = vmatprep.subr.bf16.mxu0 %v2075
  %2164 = vmatpush1.bf16.msra.mxu0 %v2074
  %2165 = vmatprep.subr.bf16.mxu0 0
  %2166 = vmatpush1.bf16.msra.mxu0 0
  %2167 = vmatprep.subr.bf16.mxu0 0
  %2168 = vmatpush1.bf16.msra.mxu0 0
  %2169 = vmatprep.subr.bf16.mxu0 0
  %2170 = vmatpush1.bf16.msra.mxu0 0
  %2171 = vmatprep.subr.bf16.mxu0 0
  %2172 = vmatpush1.bf16.msra.mxu0 0
  %2173 = vmatprep.subr.bf16.mxu0 0
  %2174 = vmatpush1.bf16.msra.mxu0 0
  %2175 = vmatprep.subr.bf16.mxu0 0
  %2176 = vmatpush1.bf16.msra.mxu0 0
  %2177 = vmatprep.subr.bf16.mxu0 0
  %2178 = vmatpush1.bf16.msra.mxu0 0
  %2179 = vmatprep.subr.bf16.mxu0 0
  %2180 = vmatpush1.bf16.msra.mxu0 0
  %2181 = vmatprep.mubr.bf16.mxu0 0
  %2182 = vmatmul.mubr.bf16.gmra.mrb[0].mxu0 %v1912
  %v2183 = vpop.f32.mrb[0].mxu0
  %v2184 = vadd.f32 0.0, %v2183
  %v2185 = vpop.f32.mrb[0].mxu0
  %v2186 = vadd.f32 0.0, %v2185
  %v2187 = vpop.f32.mrb[0].mxu0
  %v2188 = vpop.f32.mrb[0].mxu0
  %2189 = vdwg.mxu0
  %v2190 = vunpack.c.l.bf16 %v1914
  %v2191 = vunpack.c.h.bf16 %v1914
  %v2192 = vunpack.c.l.bf16 %v1915
  %v2193 = vunpack.c.h.bf16 %v1915
  %v2194 = vadd.f32 %v2190, %v2143
  %v2195 = vadd.f32 %v2191, %v2145
  %v2196 = vadd.f32 %v2192, %v2184
  %v2197 = vadd.f32 %v2193, %v2186
  %v2198 = vxor.u32 %v2194, 2147483648
  %v2199 = vxor.u32 %v2195, 2147483648
  %v2200 = vxor.u32 %v2196, 2147483648
  %v2201 = vmul.f32 %v2198, 1.442695
  %v2202 = vpow.pop %v2201
  %v2203 = vmul.f32 %v2199, 1.442695
  %v2204 = vpow.pop %v2203
  %v2205 = vmul.f32 %v2200, 1.442695
  %v2206 = vpow.pop %v2205
  %v2207 = vadd.f32 %v2202, 1.0
  %v2208 = vadd.f32 %v2204, 1.0
  %v2209 = vadd.f32 %v2206, 1.0
  %v2210 = vrcp.pop %v2207
  %v2211 = vmul.f32 1.0, %v2210
  %v2212 = vrcp.pop %v2208
  %v2213 = vmul.f32 1.0, %v2212
  %v2214 = vrcp.pop %v2209
  %v2215 = vmul.f32 1.0, %v2214
  %v2216 = vtanh.pop %v2197
  %v2217 = vld [vmem:[#allocation3] sm:$0xff]
  %v2218 = vmul.f32 %v2213, %v2217
  %v2219 = vmul.f32 %v2211, %v2216
  %v2220 = vadd.f32 %v2218, %v2219
  %v2221 = vtanh.pop %v2220
  %v2222 = vmul.f32 %v2215, %v2221
  %2223 = vst [vmem:[#allocation3] sm:$0xff] %v2220
  %v2224 = vpack.c.bf16 %v2222, %v2222
  %2225 = vst [vmem:[#allocation2] sm:$0xf] %v2224
  %s2226 = scalar_lea.vmem %s2, 24
  %2227 = vst [vmem:[%s2226] sm:$0xf] %v2224
  %v2228 = vld [vmem:[#allocation2] sm:$0xf]
  %s2229 = scalar_lea.vmem %s0, 112
  %v2230 = vld [vmem:[%s2229] sm:$0xff]
  %v2231 = vld [vmem:[%s2229 + $0x8] sm:$0xff]
  %v2232 = vld [vmem:[%s1] sm:$0xff]
  %v2233 = vld [vmem:[%s1 + $0x8] sm:$0xff]
  %v2234 = vld [vmem:[%s1 + $0x10] sm:$0xff]
  %v2235 = vld [vmem:[%s1 + $0x18] sm:$0xff]
  %v2236 = vld [vmem:[%s1 + $0x20] sm:$0xff]
  %v2237 = vld [vmem:[%s1 + $0x28] sm:$0xff]
  %v2238 = vld [vmem:[%s1 + $0x30] sm:$0xff]
  %v2239 = vld [vmem:[%s1 + $0x38] sm:$0xff]
  %v2240 = vld [vmem:[%s1 + $0x40] sm:$0xff]
  %v2241 = vld [vmem:[%s1 + $0x48] sm:$0xff]
  %v2242 = vld [vmem:[%s1 + $0x50] sm:$0xff]
  %v2243 = vld [vmem:[%s1 + $0x58] sm:$0xff]
  %v2244 = vld [vmem:[%s1 + $0x60] sm:$0xff]
  %v2245 = vld [vmem:[%s1 + $0x68] sm:$0xff]
  %v2246 = vld [vmem:[%s1 + $0x70] sm:$0xff]
  %v2247 = vld [vmem:[%s1 + $0x78] sm:$0xff]
  %v2248 = vld [vmem:[%s1 + $0x80] sm:$0xff]
  %v2249 = vld [vmem:[%s1 + $0x88] sm:$0xff]
  %v2250 = vld [vmem:[%s1 + $0x90] sm:$0xff]
  %v2251 = vld [vmem:[%s1 + $0x98] sm:$0xff]
  %v2252 = vld [vmem:[%s1 + $0xa0] sm:$0xff]
  %v2253 = vld [vmem:[%s1 + $0xa8] sm:$0xff]
  %v2254 = vld [vmem:[%s1 + $0xb0] sm:$0xff]
  %v2255 = vld [vmem:[%s1 + $0xb8] sm:$0xff]
  %v2256 = vld [vmem:[%s1 + $0xc0] sm:$0xff]
  %v2257 = vld [vmem:[%s1 + $0xc8] sm:$0xff]
  %v2258 = vld [vmem:[%s1 + $0xd0] sm:$0xff]
  %v2259 = vld [vmem:[%s1 + $0xd8] sm:$0xff]
  %v2260 = vld [vmem:[%s1 + $0xe0] sm:$0xff]
  %v2261 = vld [vmem:[%s1 + $0xe8] sm:$0xff]
  %v2262 = vld [vmem:[%s1 + $0xf0] sm:$0xff]
  %v2263 = vld [vmem:[%s1 + $0xf8] sm:$0xff]
  %v2296 = vunpack.c.l.b16 %v2232
  %v2297 = vunpack.c.h.b16 %v2232
  %v2298 = vunpack.c.l.b16 %v2233
  %v2299 = vunpack.c.h.b16 %v2233
  %v2300 = vunpack.c.l.b16 %v2234
  %v2301 = vunpack.c.h.b16 %v2234
  %v2302 = vunpack.c.l.b16 %v2235
  %v2303 = vunpack.c.h.b16 %v2235
  %v2304 = vunpack.c.l.b16 %v2236
  %v2305 = vunpack.c.h.b16 %v2236
  %v2306 = vunpack.c.l.b16 %v2237
  %v2307 = vunpack.c.h.b16 %v2237
  %v2308 = vunpack.c.l.b16 %v2238
  %v2309 = vunpack.c.h.b16 %v2238
  %v2310 = vunpack.c.l.b16 %v2239
  %v2311 = vunpack.c.h.b16 %v2239
  %v2312 = vunpack.c.l.b16 %v2240
  %v2313 = vunpack.c.h.b16 %v2240
  %v2314 = vunpack.c.l.b16 %v2241
  %v2315 = vunpack.c.h.b16 %v2241
  %v2316 = vunpack.c.l.b16 %v2242
  %v2317 = vunpack.c.h.b16 %v2242
  %v2318 = vunpack.c.l.b16 %v2243
  %v2319 = vunpack.c.h.b16 %v2243
  %v2320 = vunpack.c.l.b16 %v2244
  %v2321 = vunpack.c.h.b16 %v2244
  %v2322 = vunpack.c.l.b16 %v2245
  %v2323 = vunpack.c.h.b16 %v2245
  %v2324 = vunpack.c.l.b16 %v2246
  %v2325 = vunpack.c.h.b16 %v2246
  %v2326 = vunpack.c.l.b16 %v2247
  %v2327 = vunpack.c.h.b16 %v2247
  %v2328 = vunpack.c.l.b16 %v2248
  %v2329 = vunpack.c.h.b16 %v2248
  %v2330 = vunpack.c.l.b16 %v2249
  %v2331 = vunpack.c.h.b16 %v2249
  %v2332 = vunpack.c.l.b16 %v2250
  %v2333 = vunpack.c.h.b16 %v2250
  %v2334 = vunpack.c.l.b16 %v2251
  %v2335 = vunpack.c.h.b16 %v2251
  %v2336 = vunpack.c.l.b16 %v2252
  %v2337 = vunpack.c.h.b16 %v2252
  %v2338 = vunpack.c.l.b16 %v2253
  %v2339 = vunpack.c.h.b16 %v2253
  %v2340 = vunpack.c.l.b16 %v2254
  %v2341 = vunpack.c.h.b16 %v2254
  %v2342 = vunpack.c.l.b16 %v2255
  %v2343 = vunpack.c.h.b16 %v2255
  %v2344 = vunpack.c.l.b16 %v2256
  %v2345 = vunpack.c.h.b16 %v2256
  %v2346 = vunpack.c.l.b16 %v2257
  %v2347 = vunpack.c.h.b16 %v2257
  %v2348 = vunpack.c.l.b16 %v2258
  %v2349 = vunpack.c.h.b16 %v2258
  %v2350 = vunpack.c.l.b16 %v2259
  %v2351 = vunpack.c.h.b16 %v2259
  %v2352 = vunpack.c.l.b16 %v2260
  %v2353 = vunpack.c.h.b16 %v2260
  %v2354 = vunpack.c.l.b16 %v2261
  %v2355 = vunpack.c.h.b16 %v2261
  %v2356 = vunpack.c.l.b16 %v2262
  %v2357 = vunpack.c.h.b16 %v2262
  %v2358 = vunpack.c.l.b16 %v2263
  %v2359 = vunpack.c.h.b16 %v2263
  %v2360 = vpack.c.b16 %v2300, %v2296
  %v2361 = vpack.c.b16 %v2301, %v2297
  %v2362 = vpack.c.b16 %v2302, %v2298
  %v2363 = vpack.c.b16 %v2303, %v2299
  %v2364 = vpack.c.b16 %v2308, %v2304
  %v2365 = vpack.c.b16 %v2309, %v2305
  %v2366 = vpack.c.b16 %v2310, %v2306
  %v2367 = vpack.c.b16 %v2311, %v2307
  %v2368 = vpack.c.b16 %v2316, %v2312
  %v2369 = vpack.c.b16 %v2317, %v2313
  %v2370 = vpack.c.b16 %v2318, %v2314
  %v2371 = vpack.c.b16 %v2319, %v2315
  %v2372 = vpack.c.b16 %v2324, %v2320
  %v2373 = vpack.c.b16 %v2325, %v2321
  %v2374 = vpack.c.b16 %v2326, %v2322
  %v2375 = vpack.c.b16 %v2327, %v2323
  %v2376 = vpack.c.b16 %v2332, %v2328
  %v2377 = vpack.c.b16 %v2333, %v2329
  %v2378 = vpack.c.b16 %v2334, %v2330
  %v2379 = vpack.c.b16 %v2335, %v2331
  %v2380 = vpack.c.b16 %v2340, %v2336
  %v2381 = vpack.c.b16 %v2341, %v2337
  %v2382 = vpack.c.b16 %v2342, %v2338
  %v2383 = vpack.c.b16 %v2343, %v2339
  %v2384 = vpack.c.b16 %v2348, %v2344
  %v2385 = vpack.c.b16 %v2349, %v2345
  %v2386 = vpack.c.b16 %v2350, %v2346
  %v2387 = vpack.c.b16 %v2351, %v2347
  %v2388 = vpack.c.b16 %v2356, %v2352
  %v2389 = vpack.c.b16 %v2357, %v2353
  %v2390 = vpack.c.b16 %v2358, %v2354
  %v2391 = vpack.c.b16 %v2359, %v2355
  %2424 = vmatprep.subr.bf16.mxu0 %v2361
  %2425 = vmatpush1.bf16.msra.mxu0 %v2360
  %2426 = vmatprep.subr.bf16.mxu0 %v2365
  %2427 = vmatpush1.bf16.msra.mxu0 %v2364
  %2428 = vmatprep.subr.bf16.mxu0 %v2369
  %2429 = vmatpush1.bf16.msra.mxu0 %v2368
  %2430 = vmatprep.subr.bf16.mxu0 %v2373
  %2431 = vmatpush1.bf16.msra.mxu0 %v2372
  %2432 = vmatprep.subr.bf16.mxu0 %v2377
  %2433 = vmatpush1.bf16.msra.mxu0 %v2376
  %2434 = vmatprep.subr.bf16.mxu0 %v2381
  %2435 = vmatpush1.bf16.msra.mxu0 %v2380
  %2436 = vmatprep.subr.bf16.mxu0 %v2385
  %2437 = vmatpush1.bf16.msra.mxu0 %v2384
  %2438 = vmatprep.subr.bf16.mxu0 %v2389
  %2439 = vmatpush1.bf16.msra.mxu0 %v2388
  %2440 = vmatprep.subr.bf16.mxu0 0
  %2441 = vmatpush1.bf16.msra.mxu0 0
  %2442 = vmatprep.subr.bf16.mxu0 0
  %2443 = vmatpush1.bf16.msra.mxu0 0
  %2444 = vmatprep.subr.bf16.mxu0 0
  %2445 = vmatpush1.bf16.msra.mxu0 0
  %2446 = vmatprep.subr.bf16.mxu0 0
  %2447 = vmatpush1.bf16.msra.mxu0 0
  %2448 = vmatprep.subr.bf16.mxu0 0
  %2449 = vmatpush1.bf16.msra.mxu0 0
  %2450 = vmatprep.subr.bf16.mxu0 0
  %2451 = vmatpush1.bf16.msra.mxu0 0
  %2452 = vmatprep.subr.bf16.mxu0 0
  %2453 = vmatpush1.bf16.msra.mxu0 0
  %2454 = vmatprep.subr.bf16.mxu0 0
  %2455 = vmatpush1.bf16.msra.mxu0 0
  %2456 = vmatprep.mubr.bf16.mxu0 0
  %2457 = vmatmul.mubr.bf16.gmra.mrb[0].mxu0 %v2228
  %v2458 = vpop.f32.mrb[0].mxu0
  %v2459 = vadd.f32 0.0, %v2458
  %v2460 = vpop.f32.mrb[0].mxu0
  %v2461 = vadd.f32 0.0, %v2460
  %v2462 = vpop.f32.mrb[0].mxu0
  %v2463 = vpop.f32.mrb[0].mxu0
  %2464 = vdwg.mxu0
  %2465 = vmatprep.subr.bf16.mxu0 %v2363
  %2466 = vmatpush1.bf16.msra.mxu0 %v2362
  %2467 = vmatprep.subr.bf16.mxu0 %v2367
  %2468 = vmatpush1.bf16.msra.mxu0 %v2366
  %2469 = vmatprep.subr.bf16.mxu0 %v2371
  %2470 = vmatpush1.bf16.msra.mxu0 %v2370
  %2471 = vmatprep.subr.bf16.mxu0 %v2375
  %2472 = vmatpush1.bf16.msra.mxu0 %v2374
  %2473 = vmatprep.subr.bf16.mxu0 %v2379
  %2474 = vmatpush1.bf16.msra.mxu0 %v2378
  %2475 = vmatprep.subr.bf16.mxu0 %v2383
  %2476 = vmatpush1.bf16.msra.mxu0 %v2382
  %2477 = vmatprep.subr.bf16.mxu0 %v2387
  %2478 = vmatpush1.bf16.msra.mxu0 %v2386
  %2479 = vmatprep.subr.bf16.mxu0 %v2391
  %2480 = vmatpush1.bf16.msra.mxu0 %v2390
  %2481 = vmatprep.subr.bf16.mxu0 0
  %2482 = vmatpush1.bf16.msra.mxu0 0
  %2483 = vmatprep.subr.bf16.mxu0 0
  %2484 = vmatpush1.bf16.msra.mxu0 0
  %2485 = vmatprep.subr.bf16.mxu0 0
  %2486 = vmatpush1.bf16.msra.mxu0 0
  %2487 = vmatprep.subr.bf16.mxu0 0
  %2488 = vmatpush1.bf16.msra.mxu0 0
  %2489 = vmatprep.subr.bf16.mxu0 0
  %2490 = vmatpush1.bf16.msra.mxu0 0
  %2491 = vmatprep.subr.bf16.mxu0 0
  %2492 = vmatpush1.bf16.msra.mxu0 0
  %2493 = vmatprep.subr.bf16.mxu0 0
  %2494 = vmatpush1.bf16.msra.mxu0 0
  %2495 = vmatprep.subr.bf16.mxu0 0
  %2496 = vmatpush1.bf16.msra.mxu0 0
  %2497 = vmatprep.mubr.bf16.mxu0 0
  %2498 = vmatmul.mubr.bf16.gmra.mrb[0].mxu0 %v2228
  %v2499 = vpop.f32.mrb[0].mxu0
  %v2500 = vadd.f32 0.0, %v2499
  %v2501 = vpop.f32.mrb[0].mxu0
  %v2502 = vadd.f32 0.0, %v2501
  %v2503 = vpop.f32.mrb[0].mxu0
  %v2504 = vpop.f32.mrb[0].mxu0
  %2505 = vdwg.mxu0
  %v2506 = vunpack.c.l.bf16 %v2230
  %v2507 = vunpack.c.h.bf16 %v2230
  %v2508 = vunpack.c.l.bf16 %v2231
  %v2509 = vunpack.c.h.bf16 %v2231
  %v2510 = vadd.f32 %v2506, %v2459
  %v2511 = vadd.f32 %v2507, %v2461
  %v2512 = vadd.f32 %v2508, %v2500
  %v2513 = vadd.f32 %v2509, %v2502
  %v2514 = vxor.u32 %v2510, 2147483648
  %v2515 = vxor.u32 %v2511, 2147483648
  %v2516 = vxor.u32 %v2512, 2147483648
  %v2517 = vmul.f32 %v2514, 1.442695
  %v2518 = vpow.pop %v2517
  %v2519 = vmul.f32 %v2515, 1.442695
  %v2520 = vpow.pop %v2519
  %v2521 = vmul.f32 %v2516, 1.442695
  %v2522 = vpow.pop %v2521
  %v2523 = vadd.f32 %v2518, 1.0
  %v2524 = vadd.f32 %v2520, 1.0
  %v2525 = vadd.f32 %v2522, 1.0
  %v2526 = vrcp.pop %v2523
  %v2527 = vmul.f32 1.0, %v2526
  %v2528 = vrcp.pop %v2524
  %v2529 = vmul.f32 1.0, %v2528
  %v2530 = vrcp.pop %v2525
  %v2531 = vmul.f32 1.0, %v2530
  %v2532 = vtanh.pop %v2513
  %v2533 = vld [vmem:[#allocation3] sm:$0xff]
  %v2534 = vmul.f32 %v2529, %v2533
  %v2535 = vmul.f32 %v2527, %v2532
  %v2536 = vadd.f32 %v2534, %v2535
  %v2537 = vtanh.pop %v2536
  %v2538 = vmul.f32 %v2531, %v2537
  %2539 = vst [vmem:[#allocation3] sm:$0xff] %v2536
  %v2540 = vpack.c.bf16 %v2538, %v2538
  %2541 = vst [vmem:[#allocation2] sm:$0xf] %v2540
  %s2542 = scalar_lea.vmem %s2, 28
  %2543 = vst [vmem:[%s2542] sm:$0xf] %v2540
  // Predicated region
  $region14: #{bilstm_forward.1} parent=0 // pred_check
    _
  $region15: #{bilstm_forward.1} parent=0 // pred_check_branch
    %2545 = sbr.rel (0) target = $region17
  $region16: #{bilstm_forward.1} parent=0 // pred_region
    _
  $region17: #{bilstm_forward.1} parent=0 // pred_fallthru
    _
  // Predicated region
  $region18: #{bilstm_forward.1} parent=0 // pred_check
    _
  $region19: #{bilstm_forward.1} parent=0 // pred_check_branch
    %2547 = sbr.rel (0) target = $region21
  $region20: #{bilstm_forward.1} parent=0 // pred_region
    _
  $region21: #{bilstm_forward.1} parent=0 // pred_fallthru
    _

</llo_original>
